<compile_context>
chip_gen: v7x
topology: tpu7x:2x2x1
jax: 0.10.0
libtpu: 0.0.40
codegen_flags: <defaults>
</compile_context>

<pallas_src>
import functools

import jax
import jax.numpy as jnp
import numpy as np
from jax import lax
from jax.experimental import pallas as pl
from jax.experimental.pallas import tpu as pltpu

MXU_DTYPE = jnp.bfloat16          # matmul operand dtype (f32 accumulation)
VMEM_LIMIT = 32 * 1024 * 1024     # explicit budget; safe on v5e/v6e/v7x


def _round_up(x, m):
    return ((x + m - 1) // m) * m


# --------------------------------------------------------------------------
# Pallas kernel 1: the NeRF MLP (coarse and fine share the same kernel body)
# --------------------------------------------------------------------------
def make_mlp_kernel(depth, skips, width):
    skips = tuple(skips)

    def kernel(xp_ref, xv_ref, *refs):
        out_ref = refs[-1]
        prefs = refs[:-1]
        pos = [0]

        def nxt(k):
            vals = [prefs[pos[0] + t][...] for t in range(k)]
            pos[0] += k
            return vals

        xp = xp_ref[...]                      # [tm, Dp] f32 embedded points
        xv = xv_ref[...]                      # [tm, Dv] f32 embedded view dirs
        xp16 = xp.astype(MXU_DTYPE)
        xv16 = xv.astype(MXU_DTYPE)

        h = None
        for i in range(depth):
            if (i - 1) in skips:
                # layer whose input is concat([xp, h]) -> two summed dots
                w_xp, w_h, b = nxt(3)
                pre = (jnp.dot(xp16, w_xp, preferred_element_type=jnp.float32)
                       + jnp.dot(h.astype(MXU_DTYPE), w_h,
                                 preferred_element_type=jnp.float32) + b)
            else:
                w, b = nxt(2)
                inp = xp16 if i == 0 else h.astype(MXU_DTYPE)
                pre = jnp.dot(inp, w, preferred_element_type=jnp.float32) + b
            h = jnp.maximum(pre, 0.0)

        # fused feature_linear + alpha_linear : [W, W+1]
        wfa, bfa = nxt(2)
        fa = jnp.dot(h.astype(MXU_DTYPE), wfa,
                     preferred_element_type=jnp.float32) + bfa       # [tm, W+1]
        feat = fa[:, :width]
        alpha = fa[:, width:width + 1]

        # views branch: concat([feat, xv]) -> two summed dots
        wv_f, wv_x, bv = nxt(3)
        hv = jnp.maximum(
            jnp.dot(feat.astype(MXU_DTYPE), wv_f, preferred_element_type=jnp.float32)
            + jnp.dot(xv16, wv_x, preferred_element_type=jnp.float32) + bv, 0.0)

        wr, br = nxt(2)
        rgb = jnp.dot(hv.astype(MXU_DTYPE), wr,
                      preferred_element_type=jnp.float32) + br        # [tm, 3]

        out_ref[...] = jnp.concatenate([rgb, alpha], axis=-1)         # [tm, 4]

    return kernel


def prepare_mlp_params(params, depth, width, dp, dv, skips=(4,)):
    """Convert the 'natural' (torch-ordered) param list into the kernel layout:
    split skip/view weights, fuse feature+alpha, cast matmul operands to bf16."""
    skips = tuple(skips)
    out = []
    for j in range(depth):
        w, b = params[2 * j], params[2 * j + 1]
        if (j - 1) in skips:
            out += [w[:dp, :].astype(MXU_DTYPE), w[dp:, :].astype(MXU_DTYPE), b]
        else:
            out += [w.astype(MXU_DTYPE), b]
    wf, bf = params[2 * depth], params[2 * depth + 1]          # feature_linear
    wa, ba = params[2 * depth + 2], params[2 * depth + 3]      # alpha_linear
    out += [jnp.concatenate([wf, wa], axis=1).astype(MXU_DTYPE),
            jnp.concatenate([bf, ba], axis=1)]
    wv, bv = params[2 * depth + 4], params[2 * depth + 5]      # views_linear
    out += [wv[:width, :].astype(MXU_DTYPE), wv[width:, :].astype(MXU_DTYPE), bv]
    wr, br = params[2 * depth + 6], params[2 * depth + 7]      # rgb_linear
    out += [wr.astype(MXU_DTYPE), br]
    return out


def run_nerf_mlp_pallas(xp, xv, kparams, depth, width, skips=(4,), tm=1024):
    """xp: [Np, Dp] embedded points, xv: [Np, Dv] embedded dirs -> raw [Np, 4]."""
    n = xp.shape[0]
    tm = max(128, min(tm, _round_up(n, 128)))
    npad = _round_up(n, tm)
    xp_p = jnp.pad(xp, ((0, npad - n), (0, 0)))
    xv_p = jnp.pad(xv, ((0, npad - n), (0, 0)))

    dp, dv = xp.shape[1], xv.shape[1]

    in_specs = [
        pl.BlockSpec((tm, dp), lambda i: (i, 0)),
        pl.BlockSpec((tm, dv), lambda i: (i, 0)),
    ] + [pl.BlockSpec(p.shape, lambda i: (0, 0)) for p in kparams]

    out = pl.pallas_call(
        make_mlp_kernel(depth, tuple(skips), width),
        out_shape=jax.ShapeDtypeStruct((npad, 4), jnp.float32),
        grid_spec=pltpu.PrefetchScalarGridSpec(
            num_scalar_prefetch=0,
            grid=(npad // tm,),
            in_specs=in_specs,
            out_specs=pl.BlockSpec((tm, 4), lambda i: (i, 0)),
        ),
        compiler_params=pltpu.CompilerParams(
            dimension_semantics=("parallel",),
            vmem_limit_bytes=VMEM_LIMIT),
    )(xp_p, xv_p, *kparams)
    return out[:n]


# --------------------------------------------------------------------------
# Pallas kernel 2: volumetric renderer (raw -> rgb/disp/acc/weights/depth)
# --------------------------------------------------------------------------
def render_kernel(r_ref, g_ref, b_ref, sig_ref, d_ref, z_ref, mask_ref,
                  small_ref, w_ref):
    sigma = jnp.maximum(sig_ref[...], 0.0)          # relu (noise = 0)
    sd = sigma * d_ref[...]                         # sigma * dists  [tr, S]
    one_minus_alpha = jnp.exp(-sd)
    alpha = 1.0 - one_minus_alpha

    # exclusive cumprod of (1 - alpha + 1e-10), done in log-space as an
    # exclusive cumsum via a single MXU dot with a strictly-lower mask
    # (mask is a resident constant input, DMA'd once).
    log_t = jnp.log(one_minus_alpha + 1e-10)                      # [tr, S]
    excl = jnp.dot(log_t, mask_ref[...], preferred_element_type=jnp.float32)
    trans = jnp.exp(excl)
    weights = alpha * trans                                       # [tr, S]

    def sigmoid(x):
        return pl.reciprocal(1.0 + jnp.exp(-x), approx=True)

    rgb_r = jnp.sum(weights * sigmoid(r_ref[...]), axis=-1, keepdims=True)
    rgb_g = jnp.sum(weights * sigmoid(g_ref[...]), axis=-1, keepdims=True)
    rgb_b = jnp.sum(weights * sigmoid(b_ref[...]), axis=-1, keepdims=True)
    acc = jnp.sum(weights, axis=-1, keepdims=True)
    depth = jnp.sum(weights * z_ref[...], axis=-1, keepdims=True)
    mean_d = depth * pl.reciprocal(jnp.maximum(acc, 1e-10), approx=True)
    disp = pl.reciprocal(jnp.maximum(1e-10, mean_d), approx=True)

    pad2 = jnp.zeros((weights.shape[0], 2), jnp.float32)
    # fused small-output slab: [r, g, b, disp, acc, depth, 0, 0]
    small_ref[...] = jnp.concatenate(
        [rgb_r, rgb_g, rgb_b, disp, acc, depth, pad2], axis=-1)   # [tr, 8]
    w_ref[...] = weights


def render_pallas(raw, z_vals, rays_d, tr=256):
    n, s = z_vals.shape

    # wrapper-side lane-dense channel split + dists precompute (plain XLA)
    rr, gg, bb, sig = raw[..., 0], raw[..., 1], raw[..., 2], raw[..., 3]
    dists = jnp.concatenate(
        [z_vals[:, 1:] - z_vals[:, :-1],
         jnp.full((n, 1), 1e10, dtype=jnp.float32)], axis=-1)
    dists = dists * jnp.linalg.norm(rays_d, axis=-1, keepdims=True)

    tr = max(8, min(tr, _round_up(n, 8)))
    npad = _round_up(n, tr)

    def pad(x):
        return jnp.pad(x, ((0, npad - n), (0, 0)))

    rr, gg, bb, sig, dists_p, z_p = map(pad, (rr, gg, bb, sig, dists, z_vals))

    # strictly-lower-triangular [S, S] mask, built once (resident across grid)
    row = jnp.arange(s, dtype=jnp.int32)[:, None]
    col = jnp.arange(s, dtype=jnp.int32)[None, :]
    strict_lower = (row < col).astype(jnp.float32)

    small, weights = pl.pallas_call(
        render_kernel,
        out_shape=(
            jax.ShapeDtypeStruct((npad, 8), jnp.float32),
            jax.ShapeDtypeStruct((npad, s), jnp.float32),
        ),
        grid_spec=pltpu.PrefetchScalarGridSpec(
            num_scalar_prefetch=0,
            grid=(npad // tr,),
            in_specs=[pl.BlockSpec((tr, s), lambda i: (i, 0)) for _ in range(6)]
                     + [pl.BlockSpec((s, s), lambda i: (0, 0))],
            out_specs=[
                pl.BlockSpec((tr, 8), lambda i: (i, 0)),
                pl.BlockSpec((tr, s), lambda i: (i, 0)),
            ],
        ),
        compiler_params=pltpu.CompilerParams(
            dimension_semantics=("parallel",),
            vmem_limit_bytes=VMEM_LIMIT),
    )(rr, gg, bb, sig, dists_p, z_p, strict_lower)

    small = small[:n]
    weights = weights[:n]
    return {
        "rgb_map": small[:, 0:3],
        "disp_map": small[:, 3],
        "acc_map": small[:, 4],
        "weights": weights,
        "depth_map": small[:, 5],
    }


# --------------------------------------------------------------------------
# Plain-JAX glue: positional encoding, stratified & importance sampling
# --------------------------------------------------------------------------
def embed(x, multires):
    freqs = 2.0 ** jnp.arange(multires, dtype=jnp.float32)   # log-sampled bands
    outs = [x]
    for f in freqs:
        outs.append(jnp.sin(x * f))
        outs.append(jnp.cos(x * f))
    return jnp.concatenate(outs, axis=-1)


# TODO(synk): inverse-CDF resampling (searchsorted + gather) is data-dependent
# gather with no clean Pallas BlockSpec equivalent; kept in plain JAX.
def sample_pdf_det(bins, weights, n_importance):
    weights = weights + 1e-5
    pdf = weights / jnp.sum(weights, axis=-1, keepdims=True)
    cdf = jnp.cumsum(pdf, axis=-1)
    cdf = jnp.concatenate([jnp.zeros_like(cdf[:, :1]), cdf], axis=-1)   # [N, M]

    u = jnp.linspace(0.0, 1.0, n_importance)
    u = jnp.broadcast_to(u, (cdf.shape[0], n_importance))

    inds = jax.vmap(lambda c, uu: jnp.searchsorted(c, uu, side="right"))(cdf, u)
    below = jnp.maximum(0, inds - 1)
    above = jnp.minimum(cdf.shape[-1] - 1, inds)
    inds_g = jnp.stack([below, above], axis=-1)                         # [N, Ni, 2]

    cdf_exp = jnp.broadcast_to(cdf[:, None, :], (cdf.shape[0], n_importance, cdf.shape[-1]))
    bins_exp = jnp.broadcast_to(bins[:, None, :], (bins.shape[0], n_importance, bins.shape[-1]))
    cdf_g = jnp.take_along_axis(cdf_exp, inds_g, axis=2)
    bins_g = jnp.take_along_axis(bins_exp, inds_g, axis=2)

    denom = cdf_g[..., 1] - cdf_g[..., 0]
    denom = jnp.where(denom < 1e-5, 1.0, denom)
    t = (u - cdf_g[..., 0]) / denom
    return bins_g[..., 0] + t * (bins_g[..., 1] - bins_g[..., 0])


def eval_nerf(pts, vdirs, kparams, cfg):
    n, s, _ = pts.shape
    xp = embed(pts.reshape(-1, 3), cfg["multires"])
    xv = embed(vdirs.reshape(-1, 3), cfg["multires_views"])
    raw = run_nerf_mlp_pallas(xp, xv, kparams, depth=cfg["netdepth"],
                              width=cfg["netwidth"], skips=(4,))
    return raw.reshape(n, s, 4)


def nerf_net_forward(ray_batch, bound_batch, kparams_coarse, kparams_fine, cfg):
    rays_o, rays_d = ray_batch[0], ray_batch[1]
    old_shape = rays_d.shape
    rays_o = rays_o.reshape(-1, rays_o.shape[-1]).astype(jnp.float32)
    rays_d = rays_d.reshape(-1, rays_d.shape[-1]).astype(jnp.float32)
    viewdirs = rays_d / jnp.linalg.norm(rays_d, axis=-1, keepdims=True)

    near, far = bound_batch
    n = rays_o.shape[0]
    near = near * jnp.ones((n, 1), jnp.float32)
    far = far * jnp.ones((n, 1), jnp.float32)

    s, ni = cfg["N_samples"], cfg["N_importance"]

    # stratified sampling (test mode: perturb = 0)
    t = jnp.linspace(0.0, 1.0, s)
    z_vals = near * (1.0 - t) + far * t                            # [N, S]
    pts = rays_o[:, None, :] + rays_d[:, None, :] * z_vals[..., None]
    vdirs_c = jnp.broadcast_to(viewdirs[:, None, :], pts.shape)

    raw = eval_nerf(pts, vdirs_c, kparams_coarse, cfg)             # [N, S, 4]
    ret0 = render_pallas(raw, z_vals, rays_d)
    ret0["raw"] = raw

    # importance sampling + fine network
    z_mid = 0.5 * (z_vals[:, 1:] + z_vals[:, :-1])
    z_samples = sample_pdf_det(z_mid, ret0["weights"][:, 1:-1], ni)
    z_samples = jax.lax.stop_gradient(z_samples)
    z_all = jnp.sort(jnp.concatenate([z_vals, z_samples], axis=-1), axis=-1)
    pts_f = rays_o[:, None, :] + rays_d[:, None, :] * z_all[..., None]
    vdirs_f = jnp.broadcast_to(viewdirs[:, None, :], pts_f.shape)

    raw_f = eval_nerf(pts_f, vdirs_f, kparams_fine, cfg)           # [N, S+Ni, 4]
    ret = render_pallas(raw_f, z_all, rays_d)
    ret["raw"] = raw_f
    ret["z_std"] = jnp.std(z_samples, axis=-1)                     # unbiased=False
    for k in ret0:
        ret[k + "0"] = ret0[k]

    out = {}
    for k, v in ret.items():
        out[k] = v.reshape(tuple(old_shape[:-1]) + tuple(v.shape[1:]))
    return out


# --------------------------------------------------------------------------
# Deterministic parameter init (shapes follow NeRFMLP.__init__)
# --------------------------------------------------------------------------
def init_linear(key, fan_in, fan_out):
    kw, kb = jax.random.split(key)
    bound = 1.0 / float(np.sqrt(fan_in))
    w = jax.random.uniform(kw, (fan_in, fan_out), jnp.float32, -bound, bound)
    b = jax.random.uniform(kb, (1, fan_out), jnp.float32, -bound, bound)
    return w, b


def init_nerf_mlp_params(key, depth, width, dp, dv, skips=(4,)):
    params = []
    keys = jax.random.split(key, depth + 4)
    for j in range(depth):
        fan_in = dp if j == 0 else (width + dp if (j - 1) in skips else width)
        params += list(init_linear(keys[j], fan_in, width))
    params += list(init_linear(keys[depth], width, width))                # feature_linear
    params += list(init_linear(keys[depth + 1], width, 1))                # alpha_linear
    params += list(init_linear(keys[depth + 2], width + dv, width // 2))  # views_linear
    params += list(init_linear(keys[depth + 3], width // 2, 3))           # rgb_linear
    return params


# --------------------------------------------------------------------------
if __name__ == "__main__":
    cfg = dict(
        netdepth=8,
        netwidth=32,
        N_samples=8,
        N_importance=8,
        multires=4,
        multires_views=2,
    )
    dp = 3 + 3 * 2 * cfg["multires"]        # 27
    dv = 3 + 3 * 2 * cfg["multires_views"]  # 15

    key = jax.random.PRNGKey(0)
    k_ray_o, k_ray_d, k_coarse, k_fine = jax.random.split(key, 4)

    n_rays = 16
    rays_o = jax.random.normal(k_ray_o, (n_rays, 3), jnp.float32) * 0.1
    rays_d = jax.random.normal(k_ray_d, (n_rays, 3), jnp.float32)
    ray_batch = jnp.stack([rays_o, rays_d], axis=0)        # [2, batch, 3]
    bound_batch = (2.0, 6.0)

    params_coarse = init_nerf_mlp_params(k_coarse, cfg["netdepth"], cfg["netwidth"], dp, dv)
    params_fine = init_nerf_mlp_params(k_fine, cfg["netdepth"], cfg["netwidth"], dp, dv)
    kparams_coarse = prepare_mlp_params(params_coarse, cfg["netdepth"], cfg["netwidth"], dp, dv)
    kparams_fine = prepare_mlp_params(params_fine, cfg["netdepth"], cfg["netwidth"], dp, dv)

    out = nerf_net_forward(ray_batch, bound_batch, kparams_coarse, kparams_fine, cfg)
    out = jax.tree_util.tree_map(jax.block_until_ready, out)

    assert out["rgb_map"].shape == (n_rays, 3)
    assert out["raw"].shape == (n_rays, cfg["N_samples"] + cfg["N_importance"], 4)
    assert out["rgb_map0"].shape == (n_rays, 3)
    assert out["z_std"].shape == (n_rays,)
    assert all(bool(jnp.all(jnp.isfinite(v))) for v in jax.tree_util.tree_leaves(out))

    print("KERNEL_OK")
</pallas_src>

<mosaic_0001>
module attributes {stable_mosaic.version = 11 : i64} {
  func.func @kernel(%arg0: i32, %arg1: memref<128x27xf32, #tpu.memory_space<vmem>>, %arg2: memref<128x15xf32, #tpu.memory_space<vmem>>, %arg3: memref<27x32xbf16, #tpu.memory_space<vmem>>, %arg4: memref<1x32xf32, #tpu.memory_space<vmem>>, %arg5: memref<32x32xbf16, #tpu.memory_space<vmem>>, %arg6: memref<1x32xf32, #tpu.memory_space<vmem>>, %arg7: memref<32x32xbf16, #tpu.memory_space<vmem>>, %arg8: memref<1x32xf32, #tpu.memory_space<vmem>>, %arg9: memref<32x32xbf16, #tpu.memory_space<vmem>>, %arg10: memref<1x32xf32, #tpu.memory_space<vmem>>, %arg11: memref<32x32xbf16, #tpu.memory_space<vmem>>, %arg12: memref<1x32xf32, #tpu.memory_space<vmem>>, %arg13: memref<27x32xbf16, #tpu.memory_space<vmem>>, %arg14: memref<32x32xbf16, #tpu.memory_space<vmem>>, %arg15: memref<1x32xf32, #tpu.memory_space<vmem>>, %arg16: memref<32x32xbf16, #tpu.memory_space<vmem>>, %arg17: memref<1x32xf32, #tpu.memory_space<vmem>>, %arg18: memref<32x32xbf16, #tpu.memory_space<vmem>>, %arg19: memref<1x32xf32, #tpu.memory_space<vmem>>, %arg20: memref<32x33xbf16, #tpu.memory_space<vmem>>, %arg21: memref<1x33xf32, #tpu.memory_space<vmem>>, %arg22: memref<32x16xbf16, #tpu.memory_space<vmem>>, %arg23: memref<15x16xbf16, #tpu.memory_space<vmem>>, %arg24: memref<1x16xf32, #tpu.memory_space<vmem>>, %arg25: memref<16x3xbf16, #tpu.memory_space<vmem>>, %arg26: memref<1x3xf32, #tpu.memory_space<vmem>>, %arg27: memref<128x4xf32, #tpu.memory_space<vmem>>) attributes {dimension_semantics = [#tpu.dimension_semantics<parallel>], iteration_bounds = array<i64: 1>, scalar_prefetch = 0 : i64, scratch_operands = 0 : i64, tpu.core_type = #tpu.core_type<tc>, window_params = [{transform_indices = @transform_0, window_bounds = array<i64: 128, 27>}, {transform_indices = @transform_1, window_bounds = array<i64: 128, 15>}, {pipeline_mode = #tpu.pipeline_mode<synchronous>, transform_indices = @transform_2, window_bounds = array<i64: 27, 32>}, {pipeline_mode = #tpu.pipeline_mode<synchronous>, transform_indices = @transform_3, window_bounds = array<i64: 1, 32>}, {pipeline_mode = #tpu.pipeline_mode<synchronous>, transform_indices = @transform_4, window_bounds = array<i64: 32, 32>}, {pipeline_mode = #tpu.pipeline_mode<synchronous>, transform_indices = @transform_5, window_bounds = array<i64: 1, 32>}, {pipeline_mode = #tpu.pipeline_mode<synchronous>, transform_indices = @transform_6, window_bounds = array<i64: 32, 32>}, {pipeline_mode = #tpu.pipeline_mode<synchronous>, transform_indices = @transform_7, window_bounds = array<i64: 1, 32>}, {pipeline_mode = #tpu.pipeline_mode<synchronous>, transform_indices = @transform_8, window_bounds = array<i64: 32, 32>}, {pipeline_mode = #tpu.pipeline_mode<synchronous>, transform_indices = @transform_9, window_bounds = array<i64: 1, 32>}, {pipeline_mode = #tpu.pipeline_mode<synchronous>, transform_indices = @transform_10, window_bounds = array<i64: 32, 32>}, {pipeline_mode = #tpu.pipeline_mode<synchronous>, transform_indices = @transform_11, window_bounds = array<i64: 1, 32>}, {pipeline_mode = #tpu.pipeline_mode<synchronous>, transform_indices = @transform_12, window_bounds = array<i64: 27, 32>}, {pipeline_mode = #tpu.pipeline_mode<synchronous>, transform_indices = @transform_13, window_bounds = array<i64: 32, 32>}, {pipeline_mode = #tpu.pipeline_mode<synchronous>, transform_indices = @transform_14, window_bounds = array<i64: 1, 32>}, {pipeline_mode = #tpu.pipeline_mode<synchronous>, transform_indices = @transform_15, window_bounds = array<i64: 32, 32>}, {pipeline_mode = #tpu.pipeline_mode<synchronous>, transform_indices = @transform_16, window_bounds = array<i64: 1, 32>}, {pipeline_mode = #tpu.pipeline_mode<synchronous>, transform_indices = @transform_17, window_bounds = array<i64: 32, 32>}, {pipeline_mode = #tpu.pipeline_mode<synchronous>, transform_indices = @transform_18, window_bounds = array<i64: 1, 32>}, {pipeline_mode = #tpu.pipeline_mode<synchronous>, transform_indices = @transform_19, window_bounds = array<i64: 32, 33>}, {pipeline_mode = #tpu.pipeline_mode<synchronous>, transform_indices = @transform_20, window_bounds = array<i64: 1, 33>}, {pipeline_mode = #tpu.pipeline_mode<synchronous>, transform_indices = @transform_21, window_bounds = array<i64: 32, 16>}, {pipeline_mode = #tpu.pipeline_mode<synchronous>, transform_indices = @transform_22, window_bounds = array<i64: 15, 16>}, {pipeline_mode = #tpu.pipeline_mode<synchronous>, transform_indices = @transform_23, window_bounds = array<i64: 1, 16>}, {pipeline_mode = #tpu.pipeline_mode<synchronous>, transform_indices = @transform_24, window_bounds = array<i64: 16, 3>}, {pipeline_mode = #tpu.pipeline_mode<synchronous>, transform_indices = @transform_25, window_bounds = array<i64: 1, 3>}, {transform_indices = @transform_26, window_bounds = array<i64: 128, 4>}]} {
    %c0 = arith.constant 0 : index
    %c0_0 = arith.constant 0 : index
    %0 = vector.load %arg1[%c0, %c0_0] : memref<128x27xf32, #tpu.memory_space<vmem>>, vector<128x27xf32>
    %c0_1 = arith.constant 0 : index
    %c0_2 = arith.constant 0 : index
    %1 = vector.load %arg2[%c0_1, %c0_2] : memref<128x15xf32, #tpu.memory_space<vmem>>, vector<128x15xf32>
    %2 = arith.truncf %0 : vector<128x27xf32> to vector<128x27xbf16>
    %3 = arith.truncf %1 : vector<128x15xf32> to vector<128x15xbf16>
    %c0_3 = arith.constant 0 : index
    %c0_4 = arith.constant 0 : index
    %4 = vector.load %arg3[%c0_3, %c0_4] : memref<27x32xbf16, #tpu.memory_space<vmem>>, vector<27x32xbf16>
    %c0_5 = arith.constant 0 : index
    %c0_6 = arith.constant 0 : index
    %5 = vector.load %arg4[%c0_5, %c0_6] : memref<1x32xf32, #tpu.memory_space<vmem>>, vector<1x32xf32>
    %cst = arith.constant dense<0.000000e+00> : vector<128x32xf32>
    %6 = tpu.matmul %2, %4, %cst {dimension_numbers = #tpu.dot_dimension_numbers<[1], [0], [0], [1], [0, 0, 1, 1], [], []>} : vector<128x27xbf16>, vector<27x32xbf16>, vector<128x32xf32> -> vector<128x32xf32>
    %7 = vector.broadcast %5 : vector<1x32xf32> to vector<128x32xf32>
    %8 = arith.addf %6, %7 : vector<128x32xf32>
    %cst_7 = arith.constant 0.000000e+00 : f32
    %9 = vector.broadcast %cst_7 : f32 to vector<128x32xf32>
    %10 = arith.maximumf %8, %9 : vector<128x32xf32>
    %c0_8 = arith.constant 0 : index
    %c0_9 = arith.constant 0 : index
    %11 = vector.load %arg5[%c0_8, %c0_9] : memref<32x32xbf16, #tpu.memory_space<vmem>>, vector<32x32xbf16>
    %c0_10 = arith.constant 0 : index
    %c0_11 = arith.constant 0 : index
    %12 = vector.load %arg6[%c0_10, %c0_11] : memref<1x32xf32, #tpu.memory_space<vmem>>, vector<1x32xf32>
    %13 = arith.truncf %10 : vector<128x32xf32> to vector<128x32xbf16>
    %cst_12 = arith.constant dense<0.000000e+00> : vector<128x32xf32>
    %14 = tpu.matmul %13, %11, %cst_12 {dimension_numbers = #tpu.dot_dimension_numbers<[1], [0], [0], [1], [0, 0, 1, 1], [], []>} : vector<128x32xbf16>, vector<32x32xbf16>, vector<128x32xf32> -> vector<128x32xf32>
    %15 = vector.broadcast %12 : vector<1x32xf32> to vector<128x32xf32>
    %16 = arith.addf %14, %15 : vector<128x32xf32>
    %cst_13 = arith.constant 0.000000e+00 : f32
    %17 = vector.broadcast %cst_13 : f32 to vector<128x32xf32>
    %18 = arith.maximumf %16, %17 : vector<128x32xf32>
    %c0_14 = arith.constant 0 : index
    %c0_15 = arith.constant 0 : index
    %19 = vector.load %arg7[%c0_14, %c0_15] : memref<32x32xbf16, #tpu.memory_space<vmem>>, vector<32x32xbf16>
    %c0_16 = arith.constant 0 : index
    %c0_17 = arith.constant 0 : index
    %20 = vector.load %arg8[%c0_16, %c0_17] : memref<1x32xf32, #tpu.memory_space<vmem>>, vector<1x32xf32>
    %21 = arith.truncf %18 : vector<128x32xf32> to vector<128x32xbf16>
    %cst_18 = arith.constant dense<0.000000e+00> : vector<128x32xf32>
    %22 = tpu.matmul %21, %19, %cst_18 {dimension_numbers = #tpu.dot_dimension_numbers<[1], [0], [0], [1], [0, 0, 1, 1], [], []>} : vector<128x32xbf16>, vector<32x32xbf16>, vector<128x32xf32> -> vector<128x32xf32>
    %23 = vector.broadcast %20 : vector<1x32xf32> to vector<128x32xf32>
    %24 = arith.addf %22, %23 : vector<128x32xf32>
    %cst_19 = arith.constant 0.000000e+00 : f32
    %25 = vector.broadcast %cst_19 : f32 to vector<128x32xf32>
    %26 = arith.maximumf %24, %25 : vector<128x32xf32>
    %c0_20 = arith.constant 0 : index
    %c0_21 = arith.constant 0 : index
    %27 = vector.load %arg9[%c0_20, %c0_21] : memref<32x32xbf16, #tpu.memory_space<vmem>>, vector<32x32xbf16>
    %c0_22 = arith.constant 0 : index
    %c0_23 = arith.constant 0 : index
    %28 = vector.load %arg10[%c0_22, %c0_23] : memref<1x32xf32, #tpu.memory_space<vmem>>, vector<1x32xf32>
    %29 = arith.truncf %26 : vector<128x32xf32> to vector<128x32xbf16>
    %cst_24 = arith.constant dense<0.000000e+00> : vector<128x32xf32>
    %30 = tpu.matmul %29, %27, %cst_24 {dimension_numbers = #tpu.dot_dimension_numbers<[1], [0], [0], [1], [0, 0, 1, 1], [], []>} : vector<128x32xbf16>, vector<32x32xbf16>, vector<128x32xf32> -> vector<128x32xf32>
    %31 = vector.broadcast %28 : vector<1x32xf32> to vector<128x32xf32>
    %32 = arith.addf %30, %31 : vector<128x32xf32>
    %cst_25 = arith.constant 0.000000e+00 : f32
    %33 = vector.broadcast %cst_25 : f32 to vector<128x32xf32>
    %34 = arith.maximumf %32, %33 : vector<128x32xf32>
    %c0_26 = arith.constant 0 : index
    %c0_27 = arith.constant 0 : index
    %35 = vector.load %arg11[%c0_26, %c0_27] : memref<32x32xbf16, #tpu.memory_space<vmem>>, vector<32x32xbf16>
    %c0_28 = arith.constant 0 : index
    %c0_29 = arith.constant 0 : index
    %36 = vector.load %arg12[%c0_28, %c0_29] : memref<1x32xf32, #tpu.memory_space<vmem>>, vector<1x32xf32>
    %37 = arith.truncf %34 : vector<128x32xf32> to vector<128x32xbf16>
    %cst_30 = arith.constant dense<0.000000e+00> : vector<128x32xf32>
    %38 = tpu.matmul %37, %35, %cst_30 {dimension_numbers = #tpu.dot_dimension_numbers<[1], [0], [0], [1], [0, 0, 1, 1], [], []>} : vector<128x32xbf16>, vector<32x32xbf16>, vector<128x32xf32> -> vector<128x32xf32>
    %39 = vector.broadcast %36 : vector<1x32xf32> to vector<128x32xf32>
    %40 = arith.addf %38, %39 : vector<128x32xf32>
    %cst_31 = arith.constant 0.000000e+00 : f32
    %41 = vector.broadcast %cst_31 : f32 to vector<128x32xf32>
    %42 = arith.maximumf %40, %41 : vector<128x32xf32>
    %c0_32 = arith.constant 0 : index
    %c0_33 = arith.constant 0 : index
    %43 = vector.load %arg13[%c0_32, %c0_33] : memref<27x32xbf16, #tpu.memory_space<vmem>>, vector<27x32xbf16>
    %c0_34 = arith.constant 0 : index
    %c0_35 = arith.constant 0 : index
    %44 = vector.load %arg14[%c0_34, %c0_35] : memref<32x32xbf16, #tpu.memory_space<vmem>>, vector<32x32xbf16>
    %c0_36 = arith.constant 0 : index
    %c0_37 = arith.constant 0 : index
    %45 = vector.load %arg15[%c0_36, %c0_37] : memref<1x32xf32, #tpu.memory_space<vmem>>, vector<1x32xf32>
    %cst_38 = arith.constant dense<0.000000e+00> : vector<128x32xf32>
    %46 = tpu.matmul %2, %43, %cst_38 {dimension_numbers = #tpu.dot_dimension_numbers<[1], [0], [0], [1], [0, 0, 1, 1], [], []>} : vector<128x27xbf16>, vector<27x32xbf16>, vector<128x32xf32> -> vector<128x32xf32>
    %47 = arith.truncf %42 : vector<128x32xf32> to vector<128x32xbf16>
    %cst_39 = arith.constant dense<0.000000e+00> : vector<128x32xf32>
    %48 = tpu.matmul %47, %44, %cst_39 {dimension_numbers = #tpu.dot_dimension_numbers<[1], [0], [0], [1], [0, 0, 1, 1], [], []>} : vector<128x32xbf16>, vector<32x32xbf16>, vector<128x32xf32> -> vector<128x32xf32>
    %49 = arith.addf %46, %48 : vector<128x32xf32>
    %50 = vector.broadcast %45 : vector<1x32xf32> to vector<128x32xf32>
    %51 = arith.addf %49, %50 : vector<128x32xf32>
    %cst_40 = arith.constant 0.000000e+00 : f32
    %52 = vector.broadcast %cst_40 : f32 to vector<128x32xf32>
    %53 = arith.maximumf %51, %52 : vector<128x32xf32>
    %c0_41 = arith.constant 0 : index
    %c0_42 = arith.constant 0 : index
    %54 = vector.load %arg16[%c0_41, %c0_42] : memref<32x32xbf16, #tpu.memory_space<vmem>>, vector<32x32xbf16>
    %c0_43 = arith.constant 0 : index
    %c0_44 = arith.constant 0 : index
    %55 = vector.load %arg17[%c0_43, %c0_44] : memref<1x32xf32, #tpu.memory_space<vmem>>, vector<1x32xf32>
    %56 = arith.truncf %53 : vector<128x32xf32> to vector<128x32xbf16>
    %cst_45 = arith.constant dense<0.000000e+00> : vector<128x32xf32>
    %57 = tpu.matmul %56, %54, %cst_45 {dimension_numbers = #tpu.dot_dimension_numbers<[1], [0], [0], [1], [0, 0, 1, 1], [], []>} : vector<128x32xbf16>, vector<32x32xbf16>, vector<128x32xf32> -> vector<128x32xf32>
    %58 = vector.broadcast %55 : vector<1x32xf32> to vector<128x32xf32>
    %59 = arith.addf %57, %58 : vector<128x32xf32>
    %cst_46 = arith.constant 0.000000e+00 : f32
    %60 = vector.broadcast %cst_46 : f32 to vector<128x32xf32>
    %61 = arith.maximumf %59, %60 : vector<128x32xf32>
    %c0_47 = arith.constant 0 : index
    %c0_48 = arith.constant 0 : index
    %62 = vector.load %arg18[%c0_47, %c0_48] : memref<32x32xbf16, #tpu.memory_space<vmem>>, vector<32x32xbf16>
    %c0_49 = arith.constant 0 : index
    %c0_50 = arith.constant 0 : index
    %63 = vector.load %arg19[%c0_49, %c0_50] : memref<1x32xf32, #tpu.memory_space<vmem>>, vector<1x32xf32>
    %64 = arith.truncf %61 : vector<128x32xf32> to vector<128x32xbf16>
    %cst_51 = arith.constant dense<0.000000e+00> : vector<128x32xf32>
    %65 = tpu.matmul %64, %62, %cst_51 {dimension_numbers = #tpu.dot_dimension_numbers<[1], [0], [0], [1], [0, 0, 1, 1], [], []>} : vector<128x32xbf16>, vector<32x32xbf16>, vector<128x32xf32> -> vector<128x32xf32>
    %66 = vector.broadcast %63 : vector<1x32xf32> to vector<128x32xf32>
    %67 = arith.addf %65, %66 : vector<128x32xf32>
    %cst_52 = arith.constant 0.000000e+00 : f32
    %68 = vector.broadcast %cst_52 : f32 to vector<128x32xf32>
    %69 = arith.maximumf %67, %68 : vector<128x32xf32>
    %c0_53 = arith.constant 0 : index
    %c0_54 = arith.constant 0 : index
    %70 = vector.load %arg20[%c0_53, %c0_54] : memref<32x33xbf16, #tpu.memory_space<vmem>>, vector<32x33xbf16>
    %c0_55 = arith.constant 0 : index
    %c0_56 = arith.constant 0 : index
    %71 = vector.load %arg21[%c0_55, %c0_56] : memref<1x33xf32, #tpu.memory_space<vmem>>, vector<1x33xf32>
    %72 = arith.truncf %69 : vector<128x32xf32> to vector<128x32xbf16>
    %cst_57 = arith.constant dense<0.000000e+00> : vector<128x33xf32>
    %73 = tpu.matmul %72, %70, %cst_57 {dimension_numbers = #tpu.dot_dimension_numbers<[1], [0], [0], [1], [0, 0, 1, 1], [], []>} : vector<128x32xbf16>, vector<32x33xbf16>, vector<128x33xf32> -> vector<128x33xf32>
    %74 = vector.broadcast %71 : vector<1x33xf32> to vector<128x33xf32>
    %75 = arith.addf %73, %74 : vector<128x33xf32>
    %76 = vector.extract_strided_slice %75 {offsets = [0, 0], sizes = [128, 32], strides = [1, 1]} : vector<128x33xf32> to vector<128x32xf32>
    %77 = vector.extract_strided_slice %75 {offsets = [0, 32], sizes = [128, 1], strides = [1, 1]} : vector<128x33xf32> to vector<128x1xf32>
    %c0_58 = arith.constant 0 : index
    %c0_59 = arith.constant 0 : index
    %78 = vector.load %arg22[%c0_58, %c0_59] : memref<32x16xbf16, #tpu.memory_space<vmem>>, vector<32x16xbf16>
    %c0_60 = arith.constant 0 : index
    %c0_61 = arith.constant 0 : index
    %79 = vector.load %arg23[%c0_60, %c0_61] : memref<15x16xbf16, #tpu.memory_space<vmem>>, vector<15x16xbf16>
    %c0_62 = arith.constant 0 : index
    %c0_63 = arith.constant 0 : index
    %80 = vector.load %arg24[%c0_62, %c0_63] : memref<1x16xf32, #tpu.memory_space<vmem>>, vector<1x16xf32>
    %81 = arith.truncf %76 : vector<128x32xf32> to vector<128x32xbf16>
    %cst_64 = arith.constant dense<0.000000e+00> : vector<128x16xf32>
    %82 = tpu.matmul %81, %78, %cst_64 {dimension_numbers = #tpu.dot_dimension_numbers<[1], [0], [0], [1], [0, 0, 1, 1], [], []>} : vector<128x32xbf16>, vector<32x16xbf16>, vector<128x16xf32> -> vector<128x16xf32>
    %cst_65 = arith.constant dense<0.000000e+00> : vector<128x16xf32>
    %83 = tpu.matmul %3, %79, %cst_65 {dimension_numbers = #tpu.dot_dimension_numbers<[1], [0], [0], [1], [0, 0, 1, 1], [], []>} : vector<128x15xbf16>, vector<15x16xbf16>, vector<128x16xf32> -> vector<128x16xf32>
    %84 = arith.addf %82, %83 : vector<128x16xf32>
    %85 = vector.broadcast %80 : vector<1x16xf32> to vector<128x16xf32>
    %86 = arith.addf %84, %85 : vector<128x16xf32>
    %cst_66 = arith.constant 0.000000e+00 : f32
    %87 = vector.broadcast %cst_66 : f32 to vector<128x16xf32>
    %88 = arith.maximumf %86, %87 : vector<128x16xf32>
    %c0_67 = arith.constant 0 : index
    %c0_68 = arith.constant 0 : index
    %89 = vector.load %arg25[%c0_67, %c0_68] : memref<16x3xbf16, #tpu.memory_space<vmem>>, vector<16x3xbf16>
    %c0_69 = arith.constant 0 : index
    %c0_70 = arith.constant 0 : index
    %90 = vector.load %arg26[%c0_69, %c0_70] : memref<1x3xf32, #tpu.memory_space<vmem>>, vector<1x3xf32>
    %91 = arith.truncf %88 : vector<128x16xf32> to vector<128x16xbf16>
    %cst_71 = arith.constant dense<0.000000e+00> : vector<128x3xf32>
    %92 = tpu.matmul %91, %89, %cst_71 {dimension_numbers = #tpu.dot_dimension_numbers<[1], [0], [0], [1], [0, 0, 1, 1], [], []>} : vector<128x16xbf16>, vector<16x3xbf16>, vector<128x3xf32> -> vector<128x3xf32>
    %93 = vector.broadcast %90 : vector<1x3xf32> to vector<128x3xf32>
    %94 = arith.addf %92, %93 : vector<128x3xf32>
    %95 = tpu.concatenate %94, %77 in 1 : vector<128x3xf32>, vector<128x1xf32> -> vector<128x4xf32>
    %c0_72 = arith.constant 0 : index
    %c0_73 = arith.constant 0 : index
    %96 = vector.load %arg27[%c0_72, %c0_73] : memref<128x4xf32, #tpu.memory_space<vmem>>, vector<128x4xf32>
    tpu.vector_store %arg27[%c0_72, %c0_73], %95 {strides = array<i32>} : memref<128x4xf32, #tpu.memory_space<vmem>>, vector<128x4xf32>,
    return
  }
  func.func @transform_0(%arg0: i32) -> (i32, i32) {
    %c0_i32 = arith.constant 0 : i32
    %c0_i32_0 = arith.constant 0 : i32
    return %arg0, %c0_i32 : i32, i32
  }
  func.func @transform_1(%arg0: i32) -> (i32, i32) {
    %c0_i32 = arith.constant 0 : i32
    %c0_i32_0 = arith.constant 0 : i32
    return %arg0, %c0_i32 : i32, i32
  }
  func.func @transform_2(%arg0: i32) -> (i32, i32) {
    %c0_i32 = arith.constant 0 : i32
    %c0_i32_0 = arith.constant 0 : i32
    %c0_i32_1 = arith.constant 0 : i32
    return %c0_i32, %c0_i32_0 : i32, i32
  }
  func.func @transform_3(%arg0: i32) -> (i32, i32) {
    %c0_i32 = arith.constant 0 : i32
    %c0_i32_0 = arith.constant 0 : i32
    %c0_i32_1 = arith.constant 0 : i32
    return %c0_i32, %c0_i32_0 : i32, i32
  }
  func.func @transform_4(%arg0: i32) -> (i32, i32) {
    %c0_i32 = arith.constant 0 : i32
    %c0_i32_0 = arith.constant 0 : i32
    %c0_i32_1 = arith.constant 0 : i32
    return %c0_i32, %c0_i32_0 : i32, i32
  }
  func.func @transform_5(%arg0: i32) -> (i32, i32) {
    %c0_i32 = arith.constant 0 : i32
    %c0_i32_0 = arith.constant 0 : i32
    %c0_i32_1 = arith.constant 0 : i32
    return %c0_i32, %c0_i32_0 : i32, i32
  }
  func.func @transform_6(%arg0: i32) -> (i32, i32) {
    %c0_i32 = arith.constant 0 : i32
    %c0_i32_0 = arith.constant 0 : i32
    %c0_i32_1 = arith.constant 0 : i32
    return %c0_i32, %c0_i32_0 : i32, i32
  }
  func.func @transform_7(%arg0: i32) -> (i32, i32) {
    %c0_i32 = arith.constant 0 : i32
    %c0_i32_0 = arith.constant 0 : i32
    %c0_i32_1 = arith.constant 0 : i32
    return %c0_i32, %c0_i32_0 : i32, i32
  }
  func.func @transform_8(%arg0: i32) -> (i32, i32) {
    %c0_i32 = arith.constant 0 : i32
    %c0_i32_0 = arith.constant 0 : i32
    %c0_i32_1 = arith.constant 0 : i32
    return %c0_i32, %c0_i32_0 : i32, i32
  }
  func.func @transform_9(%arg0: i32) -> (i32, i32) {
    %c0_i32 = arith.constant 0 : i32
    %c0_i32_0 = arith.constant 0 : i32
    %c0_i32_1 = arith.constant 0 : i32
    return %c0_i32, %c0_i32_0 : i32, i32
  }
  func.func @transform_10(%arg0: i32) -> (i32, i32) {
    %c0_i32 = arith.constant 0 : i32
    %c0_i32_0 = arith.constant 0 : i32
    %c0_i32_1 = arith.constant 0 : i32
    return %c0_i32, %c0_i32_0 : i32, i32
  }
  func.func @transform_11(%arg0: i32) -> (i32, i32) {
    %c0_i32 = arith.constant 0 : i32
    %c0_i32_0 = arith.constant 0 : i32
    %c0_i32_1 = arith.constant 0 : i32
    return %c0_i32, %c0_i32_0 : i32, i32
  }
  func.func @transform_12(%arg0: i32) -> (i32, i32) {
    %c0_i32 = arith.constant 0 : i32
    %c0_i32_0 = arith.constant 0 : i32
    %c0_i32_1 = arith.constant 0 : i32
    return %c0_i32, %c0_i32_0 : i32, i32
  }
  func.func @transform_13(%arg0: i32) -> (i32, i32) {
    %c0_i32 = arith.constant 0 : i32
    %c0_i32_0 = arith.constant 0 : i32
    %c0_i32_1 = arith.constant 0 : i32
    return %c0_i32, %c0_i32_0 : i32, i32
  }
  func.func @transform_14(%arg0: i32) -> (i32, i32) {
    %c0_i32 = arith.constant 0 : i32
    %c0_i32_0 = arith.constant 0 : i32
    %c0_i32_1 = arith.constant 0 : i32
    return %c0_i32, %c0_i32_0 : i32, i32
  }
  func.func @transform_15(%arg0: i32) -> (i32, i32) {
    %c0_i32 = arith.constant 0 : i32
    %c0_i32_0 = arith.constant 0 : i32
    %c0_i32_1 = arith.constant 0 : i32
    return %c0_i32, %c0_i32_0 : i32, i32
  }
  func.func @transform_16(%arg0: i32) -> (i32, i32) {
    %c0_i32 = arith.constant 0 : i32
    %c0_i32_0 = arith.constant 0 : i32
    %c0_i32_1 = arith.constant 0 : i32
    return %c0_i32, %c0_i32_0 : i32, i32
  }
  func.func @transform_17(%arg0: i32) -> (i32, i32) {
    %c0_i32 = arith.constant 0 : i32
    %c0_i32_0 = arith.constant 0 : i32
    %c0_i32_1 = arith.constant 0 : i32
    return %c0_i32, %c0_i32_0 : i32, i32
  }
  func.func @transform_18(%arg0: i32) -> (i32, i32) {
    %c0_i32 = arith.constant 0 : i32
    %c0_i32_0 = arith.constant 0 : i32
    %c0_i32_1 = arith.constant 0 : i32
    return %c0_i32, %c0_i32_0 : i32, i32
  }
  func.func @transform_19(%arg0: i32) -> (i32, i32) {
    %c0_i32 = arith.constant 0 : i32
    %c0_i32_0 = arith.constant 0 : i32
    %c0_i32_1 = arith.constant 0 : i32
    return %c0_i32, %c0_i32_0 : i32, i32
  }
  func.func @transform_20(%arg0: i32) -> (i32, i32) {
    %c0_i32 = arith.constant 0 : i32
    %c0_i32_0 = arith.constant 0 : i32
    %c0_i32_1 = arith.constant 0 : i32
    return %c0_i32, %c0_i32_0 : i32, i32
  }
  func.func @transform_21(%arg0: i32) -> (i32, i32) {
    %c0_i32 = arith.constant 0 : i32
    %c0_i32_0 = arith.constant 0 : i32
    %c0_i32_1 = arith.constant 0 : i32
    return %c0_i32, %c0_i32_0 : i32, i32
  }
  func.func @transform_22(%arg0: i32) -> (i32, i32) {
    %c0_i32 = arith.constant 0 : i32
    %c0_i32_0 = arith.constant 0 : i32
    %c0_i32_1 = arith.constant 0 : i32
    return %c0_i32, %c0_i32_0 : i32, i32
  }
  func.func @transform_23(%arg0: i32) -> (i32, i32) {
    %c0_i32 = arith.constant 0 : i32
    %c0_i32_0 = arith.constant 0 : i32
    %c0_i32_1 = arith.constant 0 : i32
    return %c0_i32, %c0_i32_0 : i32, i32
  }
  func.func @transform_24(%arg0: i32) -> (i32, i32) {
    %c0_i32 = arith.constant 0 : i32
    %c0_i32_0 = arith.constant 0 : i32
    %c0_i32_1 = arith.constant 0 : i32
    return %c0_i32, %c0_i32_0 : i32, i32
  }
  func.func @transform_25(%arg0: i32) -> (i32, i32) {
    %c0_i32 = arith.constant 0 : i32
    %c0_i32_0 = arith.constant 0 : i32
    %c0_i32_1 = arith.constant 0 : i32
    return %c0_i32, %c0_i32_0 : i32, i32
  }
  func.func @transform_26(%arg0: i32) -> (i32, i32) {
    %c0_i32 = arith.constant 0 : i32
    %c0_i32_0 = arith.constant 0 : i32
    return %arg0, %c0_i32 : i32, i32
  }
}

</mosaic_0001>

<llo_original>
// kernel: tpu_custom_call.1
$region0: #{tpu_custom_call.1}
  #allocation0 [shape = 'u32[]', space=smem, size = 0x4, offset = 0x4, fixed_abs, tag = 'smem constant byte address 0x4 - core index']
  #allocation1 [shape = 'u32[144,128]{1,0:T(1,128)}', space=vmem, size = 0x12000, scoped, tag = 'internal scratch']
  %s0 = inlined_call_operand.vmem [shape: f32[128,27], index: 0, kind: input, shape index: {}]
  %s1 = inlined_call_operand.vmem [shape: f32[128,15], index: 1, kind: input, shape index: {}]
  %s2 = inlined_call_operand.vmem [shape: bf16[27,32], index: 2, kind: input, shape index: {}]
  %s3 = inlined_call_operand.vmem [shape: f32[1,32], index: 3, kind: input, shape index: {}]
  %s4 = inlined_call_operand.vmem [shape: bf16[32,32], index: 4, kind: input, shape index: {}]
  %s5 = inlined_call_operand.vmem [shape: f32[1,32], index: 5, kind: input, shape index: {}]
  %s6 = inlined_call_operand.vmem [shape: bf16[32,32], index: 6, kind: input, shape index: {}]
  %s7 = inlined_call_operand.vmem [shape: f32[1,32], index: 7, kind: input, shape index: {}]
  %s8 = inlined_call_operand.vmem [shape: bf16[32,32], index: 8, kind: input, shape index: {}]
  %s9 = inlined_call_operand.vmem [shape: f32[1,32], index: 9, kind: input, shape index: {}]
  %s10 = inlined_call_operand.vmem [shape: bf16[32,32], index: 10, kind: input, shape index: {}]
  %s11 = inlined_call_operand.vmem [shape: f32[1,32], index: 11, kind: input, shape index: {}]
  %s12 = inlined_call_operand.vmem [shape: bf16[27,32], index: 12, kind: input, shape index: {}]
  %s13 = inlined_call_operand.vmem [shape: bf16[32,32], index: 13, kind: input, shape index: {}]
  %s14 = inlined_call_operand.vmem [shape: f32[1,32], index: 14, kind: input, shape index: {}]
  %s15 = inlined_call_operand.vmem [shape: bf16[32,32], index: 15, kind: input, shape index: {}]
  %s16 = inlined_call_operand.vmem [shape: f32[1,32], index: 16, kind: input, shape index: {}]
  %s17 = inlined_call_operand.vmem [shape: bf16[32,32], index: 17, kind: input, shape index: {}]
  %s18 = inlined_call_operand.vmem [shape: f32[1,32], index: 18, kind: input, shape index: {}]
  %s19 = inlined_call_operand.vmem [shape: bf16[32,33], index: 19, kind: input, shape index: {}]
  %s20 = inlined_call_operand.vmem [shape: f32[1,33], index: 20, kind: input, shape index: {}]
  %s21 = inlined_call_operand.vmem [shape: bf16[32,16], index: 21, kind: input, shape index: {}]
  %s22 = inlined_call_operand.vmem [shape: bf16[15,16], index: 22, kind: input, shape index: {}]
  %s23 = inlined_call_operand.vmem [shape: f32[1,16], index: 23, kind: input, shape index: {}]
  %s24 = inlined_call_operand.vmem [shape: bf16[16,3], index: 24, kind: input, shape index: {}]
  %s25 = inlined_call_operand.vmem [shape: f32[1,3], index: 25, kind: input, shape index: {}]
  %s26 = inlined_call_operand.vmem [shape: f32[128,4], index: 26, kind: output, shape index: {}]
  %s27 = sld [smem:[#allocation0]]
  $region114: #{tpu_custom_call.1} parent=0
    _
  %s29 = ssub.s32 1, %s27
  %s30 = scalar_select 0, %s29, %s27
  // Predicated region
  $region2: #{tpu_custom_call.1} parent=0 // pred_check
    _
  $region3: #{tpu_custom_call.1} parent=0 // pred_check_branch
    %32 = sbr.rel (0) target = $region5
  $region4: #{tpu_custom_call.1} parent=0 // pred_region
    _
  $region5: #{tpu_custom_call.1} parent=0 // pred_fallthru
    _
  // Predicated region
  $region6: #{tpu_custom_call.1} parent=0 // pred_check
    _
  $region7: #{tpu_custom_call.1} parent=0 // pred_check_branch
    %34 = sbr.rel (0) target = $region9
  $region8: #{tpu_custom_call.1} parent=0 // pred_region
    _
  $region9: #{tpu_custom_call.1} parent=0 // pred_fallthru
    _
  // Predicated region
  $region10: #{tpu_custom_call.1} parent=0 // pred_check
    _
  $region11: #{tpu_custom_call.1} parent=0 // pred_check_branch
    %36 = sbr.rel (0) target = $region13
  $region12: #{tpu_custom_call.1} parent=0 // pred_region
    _
  $region13: #{tpu_custom_call.1} parent=0 // pred_fallthru
    _
  // Predicated region
  $region14: #{tpu_custom_call.1} parent=0 // pred_check
    _
  $region15: #{tpu_custom_call.1} parent=0 // pred_check_branch
    %38 = sbr.rel (0) target = $region17
  $region16: #{tpu_custom_call.1} parent=0 // pred_region
    _
  $region17: #{tpu_custom_call.1} parent=0 // pred_fallthru
    _
  // Predicated region
  $region18: #{tpu_custom_call.1} parent=0 // pred_check
    _
  $region19: #{tpu_custom_call.1} parent=0 // pred_check_branch
    %40 = sbr.rel (0) target = $region21
  $region20: #{tpu_custom_call.1} parent=0 // pred_region
    _
  $region21: #{tpu_custom_call.1} parent=0 // pred_fallthru
    _
  // Predicated region
  $region22: #{tpu_custom_call.1} parent=0 // pred_check
    _
  $region23: #{tpu_custom_call.1} parent=0 // pred_check_branch
    %42 = sbr.rel (0) target = $region25
  $region24: #{tpu_custom_call.1} parent=0 // pred_region
    _
  $region25: #{tpu_custom_call.1} parent=0 // pred_fallthru
    _
  // Predicated region
  $region26: #{tpu_custom_call.1} parent=0 // pred_check
    _
  $region27: #{tpu_custom_call.1} parent=0 // pred_check_branch
    %44 = sbr.rel (0) target = $region29
  $region28: #{tpu_custom_call.1} parent=0 // pred_region
    _
  $region29: #{tpu_custom_call.1} parent=0 // pred_fallthru
    _
  // Predicated region
  $region30: #{tpu_custom_call.1} parent=0 // pred_check
    _
  $region31: #{tpu_custom_call.1} parent=0 // pred_check_branch
    %46 = sbr.rel (0) target = $region33
  $region32: #{tpu_custom_call.1} parent=0 // pred_region
    _
  $region33: #{tpu_custom_call.1} parent=0 // pred_fallthru
    _
  // Predicated region
  $region34: #{tpu_custom_call.1} parent=0 // pred_check
    _
  $region35: #{tpu_custom_call.1} parent=0 // pred_check_branch
    %48 = sbr.rel (0) target = $region37
  $region36: #{tpu_custom_call.1} parent=0 // pred_region
    _
  $region37: #{tpu_custom_call.1} parent=0 // pred_fallthru
    _
  // Predicated region
  $region38: #{tpu_custom_call.1} parent=0 // pred_check
    _
  $region39: #{tpu_custom_call.1} parent=0 // pred_check_branch
    %50 = sbr.rel (0) target = $region41
  $region40: #{tpu_custom_call.1} parent=0 // pred_region
    _
  $region41: #{tpu_custom_call.1} parent=0 // pred_fallthru
    _
  // Predicated region
  $region42: #{tpu_custom_call.1} parent=0 // pred_check
    _
  $region43: #{tpu_custom_call.1} parent=0 // pred_check_branch
    %52 = sbr.rel (0) target = $region45
  $region44: #{tpu_custom_call.1} parent=0 // pred_region
    _
  $region45: #{tpu_custom_call.1} parent=0 // pred_fallthru
    _
  // Predicated region
  $region46: #{tpu_custom_call.1} parent=0 // pred_check
    _
  $region47: #{tpu_custom_call.1} parent=0 // pred_check_branch
    %54 = sbr.rel (0) target = $region49
  $region48: #{tpu_custom_call.1} parent=0 // pred_region
    _
  $region49: #{tpu_custom_call.1} parent=0 // pred_fallthru
    _
  // Predicated region
  $region50: #{tpu_custom_call.1} parent=0 // pred_check
    _
  $region51: #{tpu_custom_call.1} parent=0 // pred_check_branch
    %56 = sbr.rel (0) target = $region53
  $region52: #{tpu_custom_call.1} parent=0 // pred_region
    _
  $region53: #{tpu_custom_call.1} parent=0 // pred_fallthru
    _
  // Predicated region
  $region54: #{tpu_custom_call.1} parent=0 // pred_check
    _
  $region55: #{tpu_custom_call.1} parent=0 // pred_check_branch
    %58 = sbr.rel (0) target = $region57
  $region56: #{tpu_custom_call.1} parent=0 // pred_region
    _
  $region57: #{tpu_custom_call.1} parent=0 // pred_fallthru
    _
  // Predicated region
  $region58: #{tpu_custom_call.1} parent=0 // pred_check
    _
  $region59: #{tpu_custom_call.1} parent=0 // pred_check_branch
    %60 = sbr.rel (0) target = $region61
  $region60: #{tpu_custom_call.1} parent=0 // pred_region
    _
  $region61: #{tpu_custom_call.1} parent=0 // pred_fallthru
    _
  // Predicated region
  $region62: #{tpu_custom_call.1} parent=0 // pred_check
    _
  $region63: #{tpu_custom_call.1} parent=0 // pred_check_branch
    %62 = sbr.rel (0) target = $region65
  $region64: #{tpu_custom_call.1} parent=0 // pred_region
    _
  $region65: #{tpu_custom_call.1} parent=0 // pred_fallthru
    _
  // Predicated region
  $region66: #{tpu_custom_call.1} parent=0 // pred_check
    _
  $region67: #{tpu_custom_call.1} parent=0 // pred_check_branch
    %64 = sbr.rel (0) target = $region69
  $region68: #{tpu_custom_call.1} parent=0 // pred_region
    _
  $region69: #{tpu_custom_call.1} parent=0 // pred_fallthru
    _
  // Predicated region
  $region70: #{tpu_custom_call.1} parent=0 // pred_check
    _
  $region71: #{tpu_custom_call.1} parent=0 // pred_check_branch
    %66 = sbr.rel (0) target = $region73
  $region72: #{tpu_custom_call.1} parent=0 // pred_region
    _
  $region73: #{tpu_custom_call.1} parent=0 // pred_fallthru
    _
  // Predicated region
  $region74: #{tpu_custom_call.1} parent=0 // pred_check
    _
  $region75: #{tpu_custom_call.1} parent=0 // pred_check_branch
    %68 = sbr.rel (0) target = $region77
  $region76: #{tpu_custom_call.1} parent=0 // pred_region
    _
  $region77: #{tpu_custom_call.1} parent=0 // pred_fallthru
    _
  // Predicated region
  $region78: #{tpu_custom_call.1} parent=0 // pred_check
    _
  $region79: #{tpu_custom_call.1} parent=0 // pred_check_branch
    %70 = sbr.rel (0) target = $region81
  $region80: #{tpu_custom_call.1} parent=0 // pred_region
    _
  $region81: #{tpu_custom_call.1} parent=0 // pred_fallthru
    _
  // Predicated region
  $region82: #{tpu_custom_call.1} parent=0 // pred_check
    _
  $region83: #{tpu_custom_call.1} parent=0 // pred_check_branch
    %72 = sbr.rel (0) target = $region85
  $region84: #{tpu_custom_call.1} parent=0 // pred_region
    _
  $region85: #{tpu_custom_call.1} parent=0 // pred_fallthru
    _
  // Predicated region
  $region86: #{tpu_custom_call.1} parent=0 // pred_check
    _
  $region87: #{tpu_custom_call.1} parent=0 // pred_check_branch
    %74 = sbr.rel (0) target = $region89
  $region88: #{tpu_custom_call.1} parent=0 // pred_region
    _
  $region89: #{tpu_custom_call.1} parent=0 // pred_fallthru
    _
  // Predicated region
  $region90: #{tpu_custom_call.1} parent=0 // pred_check
    _
  $region91: #{tpu_custom_call.1} parent=0 // pred_check_branch
    %76 = sbr.rel (0) target = $region93
  $region92: #{tpu_custom_call.1} parent=0 // pred_region
    _
  $region93: #{tpu_custom_call.1} parent=0 // pred_fallthru
    _
  // Predicated region
  $region94: #{tpu_custom_call.1} parent=0 // pred_check
    _
  $region95: #{tpu_custom_call.1} parent=0 // pred_check_branch
    %78 = sbr.rel (0) target = $region97
  $region96: #{tpu_custom_call.1} parent=0 // pred_region
    _
  $region97: #{tpu_custom_call.1} parent=0 // pred_fallthru
    _
  // Predicated region
  $region98: #{tpu_custom_call.1} parent=0 // pred_check
    _
  $region99: #{tpu_custom_call.1} parent=0 // pred_check_branch
    %80 = sbr.rel (0) target = $region101
  $region100: #{tpu_custom_call.1} parent=0 // pred_region
    _
  $region101: #{tpu_custom_call.1} parent=0 // pred_fallthru
    _
  // Predicated region
  $region102: #{tpu_custom_call.1} parent=0 // pred_check
    _
  $region103: #{tpu_custom_call.1} parent=0 // pred_check_branch
    %82 = sbr.rel (0) target = $region105
  $region104: #{tpu_custom_call.1} parent=0 // pred_region
    _
  $region105: #{tpu_custom_call.1} parent=0 // pred_fallthru
    _
  %v84 = vld [vmem:[%s0] sm:$0xff]
  %v85 = vld [vmem:[%s0 + $0x8] sm:$0xff]
  %v86 = vld [vmem:[%s0 + $0x10] sm:$0xff]
  %v87 = vld [vmem:[%s0 + $0x18] sm:$0xff]
  %v88 = vld [vmem:[%s0 + $0x20] sm:$0xff]
  %v89 = vld [vmem:[%s0 + $0x28] sm:$0xff]
  %v90 = vld [vmem:[%s0 + $0x30] sm:$0xff]
  %v91 = vld [vmem:[%s0 + $0x38] sm:$0xff]
  %v92 = vld [vmem:[%s0 + $0x40] sm:$0xff]
  %v93 = vld [vmem:[%s0 + $0x48] sm:$0xff]
  %v94 = vld [vmem:[%s0 + $0x50] sm:$0xff]
  %v95 = vld [vmem:[%s0 + $0x58] sm:$0xff]
  %v96 = vld [vmem:[%s0 + $0x60] sm:$0xff]
  %v97 = vld [vmem:[%s0 + $0x68] sm:$0xff]
  %v98 = vld [vmem:[%s0 + $0x70] sm:$0xff]
  %v99 = vld [vmem:[%s0 + $0x78] sm:$0xff]
  %v100 = vld [vmem:[%s1] sm:$0xff]
  %v101 = vld [vmem:[%s1 + $0x8] sm:$0xff]
  %v102 = vld [vmem:[%s1 + $0x10] sm:$0xff]
  %v103 = vld [vmem:[%s1 + $0x18] sm:$0xff]
  %v104 = vld [vmem:[%s1 + $0x20] sm:$0xff]
  %v105 = vld [vmem:[%s1 + $0x28] sm:$0xff]
  %v106 = vld [vmem:[%s1 + $0x30] sm:$0xff]
  %v107 = vld [vmem:[%s1 + $0x38] sm:$0xff]
  %v108 = vld [vmem:[%s1 + $0x40] sm:$0xff]
  %v109 = vld [vmem:[%s1 + $0x48] sm:$0xff]
  %v110 = vld [vmem:[%s1 + $0x50] sm:$0xff]
  %v111 = vld [vmem:[%s1 + $0x58] sm:$0xff]
  %v112 = vld [vmem:[%s1 + $0x60] sm:$0xff]
  %v113 = vld [vmem:[%s1 + $0x68] sm:$0xff]
  %v114 = vld [vmem:[%s1 + $0x70] sm:$0xff]
  %v115 = vld [vmem:[%s1 + $0x78] sm:$0xff]
  %v116 = vpack.c.bf16 %v85, %v84
  %v117 = vpack.c.bf16 %v87, %v86
  %v118 = vpack.c.bf16 %v89, %v88
  %v119 = vpack.c.bf16 %v91, %v90
  %v120 = vpack.c.bf16 %v93, %v92
  %v121 = vpack.c.bf16 %v95, %v94
  %v122 = vpack.c.bf16 %v97, %v96
  %v123 = vpack.c.bf16 %v99, %v98
  %v124 = vpack.c.bf16 %v101, %v100
  %v125 = vpack.c.bf16 %v103, %v102
  %v126 = vpack.c.bf16 %v105, %v104
  %v127 = vpack.c.bf16 %v107, %v106
  %v128 = vpack.c.bf16 %v109, %v108
  %v129 = vpack.c.bf16 %v111, %v110
  %v130 = vpack.c.bf16 %v113, %v112
  %v131 = vpack.c.bf16 %v115, %v114
  %v132 = vld [vmem:[%s2] sm:$0xf]
  %v133 = vld [vmem:[%s2 + $0x4] sm:$0xf]
  %v134 = vld [vmem:[%s2 + $0x8] sm:$0xf]
  %v135 = vld [vmem:[%s2 + $0xc] sm:$0x3]
  %v136 = vld [vmem:[%s3] sm:$0x1]
  %v138 = vlaneseq
  %v139 = vshrl.u32 %v138, 7
  %v140 = vsub.s32 0, %v139
  %v141 = vrot.slane %v136, %v140
  %v147 = vunpack.c.l.b16 %v132
  %v148 = vunpack.c.l.b16 %v133
  %v149 = vunpack.c.l.b16 %v134
  %v150 = vunpack.c.l.b16 %v135
  %v151 = vpack.c.b16 %v148, %v147
  %v152 = vpack.c.b16 %v150, %v149
  %vm154 = vcmask 220160
  %v156 = vsel %vm154, %v116, 0
  %v159 = vsel %vm154, %v117, 0
  %v162 = vsel %vm154, %v118, 0
  %v165 = vsel %vm154, %v119, 0
  %v168 = vsel %vm154, %v120, 0
  %v171 = vsel %vm154, %v121, 0
  %v174 = vsel %vm154, %v122, 0
  %v177 = vsel %vm154, %v123, 0
  %vm179 = vcmask 1044480
  %vm180 = vcmask 1045504
  %v181 = vsel %vm179, 4294967295, 65535
  %v182 = vsel %vm180, %v181, 0
  %v184 = vand.u32 %v152, %v182
  %186 = vmatprep.subr.bf16.mxu0 0
  %187 = vmatpush1.bf16.msra.mxu0 %v151
  %188 = vmatprep.subr.bf16.mxu0 0
  %189 = vmatpush1.bf16.msra.mxu0 %v184
  %190 = vmatprep.subr.bf16.mxu0 0
  %191 = vmatpush1.bf16.msra.mxu0 0
  %192 = vmatprep.subr.bf16.mxu0 0
  %193 = vmatpush1.bf16.msra.mxu0 0
  %194 = vmatprep.subr.bf16.mxu0 0
  %195 = vmatpush1.bf16.msra.mxu0 0
  %196 = vmatprep.subr.bf16.mxu0 0
  %197 = vmatpush1.bf16.msra.mxu0 0
  %198 = vmatprep.subr.bf16.mxu0 0
  %199 = vmatpush1.bf16.msra.mxu0 0
  %200 = vmatprep.subr.bf16.mxu0 0
  %201 = vmatpush1.bf16.msra.mxu0 0
  %202 = vmatprep.subr.bf16.mxu0 0
  %203 = vmatpush1.bf16.msra.mxu0 0
  %204 = vmatprep.subr.bf16.mxu0 0
  %205 = vmatpush1.bf16.msra.mxu0 0
  %206 = vmatprep.subr.bf16.mxu0 0
  %207 = vmatpush1.bf16.msra.mxu0 0
  %208 = vmatprep.subr.bf16.mxu0 0
  %209 = vmatpush1.bf16.msra.mxu0 0
  %210 = vmatprep.subr.bf16.mxu0 0
  %211 = vmatpush1.bf16.msra.mxu0 0
  %212 = vmatprep.subr.bf16.mxu0 0
  %213 = vmatpush1.bf16.msra.mxu0 0
  %214 = vmatprep.subr.bf16.mxu0 0
  %215 = vmatpush1.bf16.msra.mxu0 0
  %216 = vmatprep.subr.bf16.mxu0 0
  %217 = vmatpush1.bf16.msra.mxu0 0
  %218 = vmatprep.mubr.bf16.mxu0 0
  %219 = vmatmul.mubr.bf16.gmra.mrb[0].mxu0 %v156
  %v220 = vpop.f32.mrb[0].mxu0
  %v221 = vadd.f32 %v141, %v220
  %v222 = vpop.f32.mrb[0].mxu0
  %v223 = vpop.f32.mrb[0].mxu0
  %v224 = vadd.f32 %v141, %v223
  %v225 = vpop.f32.mrb[0].mxu0
  %226 = vmatprep.mubr.bf16.mxu0 0
  %227 = vmatmul.mubr.bf16.gmra.mrb[0].mxu0 %v159
  %v228 = vpop.f32.mrb[0].mxu0
  %v229 = vadd.f32 %v141, %v228
  %v230 = vpop.f32.mrb[0].mxu0
  %v231 = vpop.f32.mrb[0].mxu0
  %v232 = vadd.f32 %v141, %v231
  %v233 = vpop.f32.mrb[0].mxu0
  %234 = vmatprep.mubr.bf16.mxu0 0
  %235 = vmatmul.mubr.bf16.gmra.mrb[0].mxu0 %v162
  %v236 = vpop.f32.mrb[0].mxu0
  %v237 = vadd.f32 %v141, %v236
  %v238 = vpop.f32.mrb[0].mxu0
  %v239 = vpop.f32.mrb[0].mxu0
  %v240 = vadd.f32 %v141, %v239
  %v241 = vpop.f32.mrb[0].mxu0
  %242 = vmatprep.mubr.bf16.mxu0 0
  %243 = vmatmul.mubr.bf16.gmra.mrb[0].mxu0 %v165
  %v244 = vpop.f32.mrb[0].mxu0
  %v245 = vadd.f32 %v141, %v244
  %v246 = vpop.f32.mrb[0].mxu0
  %v247 = vpop.f32.mrb[0].mxu0
  %v248 = vadd.f32 %v141, %v247
  %v249 = vpop.f32.mrb[0].mxu0
  %250 = vmatprep.mubr.bf16.mxu0 0
  %251 = vmatmul.mubr.bf16.gmra.mrb[0].mxu0 %v168
  %v252 = vpop.f32.mrb[0].mxu0
  %v253 = vadd.f32 %v141, %v252
  %v254 = vpop.f32.mrb[0].mxu0
  %v255 = vpop.f32.mrb[0].mxu0
  %v256 = vadd.f32 %v141, %v255
  %v257 = vpop.f32.mrb[0].mxu0
  %258 = vmatprep.mubr.bf16.mxu0 0
  %259 = vmatmul.mubr.bf16.gmra.mrb[0].mxu0 %v171
  %v260 = vpop.f32.mrb[0].mxu0
  %v261 = vadd.f32 %v141, %v260
  %v262 = vpop.f32.mrb[0].mxu0
  %v263 = vpop.f32.mrb[0].mxu0
  %v264 = vadd.f32 %v141, %v263
  %v265 = vpop.f32.mrb[0].mxu0
  %266 = vmatprep.mubr.bf16.mxu0 0
  %267 = vmatmul.mubr.bf16.gmra.mrb[0].mxu0 %v174
  %v268 = vpop.f32.mrb[0].mxu0
  %v269 = vadd.f32 %v141, %v268
  %v270 = vpop.f32.mrb[0].mxu0
  %v271 = vpop.f32.mrb[0].mxu0
  %v272 = vadd.f32 %v141, %v271
  %v273 = vpop.f32.mrb[0].mxu0
  %274 = vmatprep.mubr.bf16.mxu0 0
  %275 = vmatmul.mubr.bf16.gmra.mrb[0].mxu0 %v177
  %v276 = vpop.f32.mrb[0].mxu0
  %v277 = vadd.f32 %v141, %v276
  %v278 = vpop.f32.mrb[0].mxu0
  %v279 = vpop.f32.mrb[0].mxu0
  %v280 = vadd.f32 %v141, %v279
  %v281 = vpop.f32.mrb[0].mxu0
  %282 = vdwg.mxu0
  %v283 = vmax.f32 %v221, 0.0
  %v284 = vmax.f32 %v224, 0.0
  %v285 = vmax.f32 %v229, 0.0
  %v286 = vmax.f32 %v232, 0.0
  %v287 = vmax.f32 %v237, 0.0
  %v288 = vmax.f32 %v240, 0.0
  %v289 = vmax.f32 %v245, 0.0
  %v290 = vmax.f32 %v248, 0.0
  %v291 = vmax.f32 %v253, 0.0
  %v292 = vmax.f32 %v256, 0.0
  %v293 = vmax.f32 %v261, 0.0
  %v294 = vmax.f32 %v264, 0.0
  %v295 = vmax.f32 %v269, 0.0
  %v296 = vmax.f32 %v272, 0.0
  %v297 = vmax.f32 %v277, 0.0
  %v298 = vmax.f32 %v280, 0.0
  %v299 = vld [vmem:[%s4] sm:$0xf]
  %v300 = vld [vmem:[%s4 + $0x4] sm:$0xf]
  %v301 = vld [vmem:[%s4 + $0x8] sm:$0xf]
  %v302 = vld [vmem:[%s4 + $0xc] sm:$0xf]
  %v303 = vld [vmem:[%s5] sm:$0x1]
  %v304 = vpack.c.bf16 %v284, %v283
  %v305 = vpack.c.bf16 %v286, %v285
  %v306 = vpack.c.bf16 %v288, %v287
  %v307 = vpack.c.bf16 %v290, %v289
  %v308 = vpack.c.bf16 %v292, %v291
  %v309 = vpack.c.bf16 %v294, %v293
  %v310 = vpack.c.bf16 %v296, %v295
  %v311 = vpack.c.bf16 %v298, %v297
  %v313 = vlaneseq
  %v314 = vshrl.u32 %v313, 7
  %v315 = vsub.s32 0, %v314
  %v316 = vrot.slane %v303, %v315
  %v322 = vunpack.c.l.b16 %v299
  %v323 = vunpack.c.l.b16 %v300
  %v324 = vunpack.c.l.b16 %v301
  %v325 = vunpack.c.l.b16 %v302
  %v326 = vpack.c.b16 %v323, %v322
  %v327 = vpack.c.b16 %v325, %v324
  %vm330 = vcmask 261120
  %v332 = vsel %vm330, %v304, 0
  %v335 = vsel %vm330, %v305, 0
  %v338 = vsel %vm330, %v306, 0
  %v341 = vsel %vm330, %v307, 0
  %v344 = vsel %vm330, %v308, 0
  %v347 = vsel %vm330, %v309, 0
  %v350 = vsel %vm330, %v310, 0
  %v353 = vsel %vm330, %v311, 0
  %355 = vmatprep.subr.bf16.mxu0 0
  %356 = vmatpush1.bf16.msra.mxu0 %v326
  %357 = vmatprep.subr.bf16.mxu0 0
  %358 = vmatpush1.bf16.msra.mxu0 %v327
  %359 = vmatprep.subr.bf16.mxu0 0
  %360 = vmatpush1.bf16.msra.mxu0 0
  %361 = vmatprep.subr.bf16.mxu0 0
  %362 = vmatpush1.bf16.msra.mxu0 0
  %363 = vmatprep.subr.bf16.mxu0 0
  %364 = vmatpush1.bf16.msra.mxu0 0
  %365 = vmatprep.subr.bf16.mxu0 0
  %366 = vmatpush1.bf16.msra.mxu0 0
  %367 = vmatprep.subr.bf16.mxu0 0
  %368 = vmatpush1.bf16.msra.mxu0 0
  %369 = vmatprep.subr.bf16.mxu0 0
  %370 = vmatpush1.bf16.msra.mxu0 0
  %371 = vmatprep.subr.bf16.mxu0 0
  %372 = vmatpush1.bf16.msra.mxu0 0
  %373 = vmatprep.subr.bf16.mxu0 0
  %374 = vmatpush1.bf16.msra.mxu0 0
  %375 = vmatprep.subr.bf16.mxu0 0
  %376 = vmatpush1.bf16.msra.mxu0 0
  %377 = vmatprep.subr.bf16.mxu0 0
  %378 = vmatpush1.bf16.msra.mxu0 0
  %379 = vmatprep.subr.bf16.mxu0 0
  %380 = vmatpush1.bf16.msra.mxu0 0
  %381 = vmatprep.subr.bf16.mxu0 0
  %382 = vmatpush1.bf16.msra.mxu0 0
  %383 = vmatprep.subr.bf16.mxu0 0
  %384 = vmatpush1.bf16.msra.mxu0 0
  %385 = vmatprep.subr.bf16.mxu0 0
  %386 = vmatpush1.bf16.msra.mxu0 0
  %387 = vmatprep.mubr.bf16.mxu0 0
  %388 = vmatmul.mubr.bf16.gmra.mrb[0].mxu0 %v332
  %v389 = vpop.f32.mrb[0].mxu0
  %v390 = vadd.f32 %v316, %v389
  %v391 = vpop.f32.mrb[0].mxu0
  %v392 = vpop.f32.mrb[0].mxu0
  %v393 = vadd.f32 %v316, %v392
  %v394 = vpop.f32.mrb[0].mxu0
  %395 = vmatprep.mubr.bf16.mxu0 0
  %396 = vmatmul.mubr.bf16.gmra.mrb[0].mxu0 %v335
  %v397 = vpop.f32.mrb[0].mxu0
  %v398 = vadd.f32 %v316, %v397
  %v399 = vpop.f32.mrb[0].mxu0
  %v400 = vpop.f32.mrb[0].mxu0
  %v401 = vadd.f32 %v316, %v400
  %v402 = vpop.f32.mrb[0].mxu0
  %403 = vmatprep.mubr.bf16.mxu0 0
  %404 = vmatmul.mubr.bf16.gmra.mrb[0].mxu0 %v338
  %v405 = vpop.f32.mrb[0].mxu0
  %v406 = vadd.f32 %v316, %v405
  %v407 = vpop.f32.mrb[0].mxu0
  %v408 = vpop.f32.mrb[0].mxu0
  %v409 = vadd.f32 %v316, %v408
  %v410 = vpop.f32.mrb[0].mxu0
  %411 = vmatprep.mubr.bf16.mxu0 0
  %412 = vmatmul.mubr.bf16.gmra.mrb[0].mxu0 %v341
  %v413 = vpop.f32.mrb[0].mxu0
  %v414 = vadd.f32 %v316, %v413
  %v415 = vpop.f32.mrb[0].mxu0
  %v416 = vpop.f32.mrb[0].mxu0
  %v417 = vadd.f32 %v316, %v416
  %v418 = vpop.f32.mrb[0].mxu0
  %419 = vmatprep.mubr.bf16.mxu0 0
  %420 = vmatmul.mubr.bf16.gmra.mrb[0].mxu0 %v344
  %v421 = vpop.f32.mrb[0].mxu0
  %v422 = vadd.f32 %v316, %v421
  %v423 = vpop.f32.mrb[0].mxu0
  %v424 = vpop.f32.mrb[0].mxu0
  %v425 = vadd.f32 %v316, %v424
  %v426 = vpop.f32.mrb[0].mxu0
  %427 = vmatprep.mubr.bf16.mxu0 0
  %428 = vmatmul.mubr.bf16.gmra.mrb[0].mxu0 %v347
  %v429 = vpop.f32.mrb[0].mxu0
  %v430 = vadd.f32 %v316, %v429
  %v431 = vpop.f32.mrb[0].mxu0
  %v432 = vpop.f32.mrb[0].mxu0
  %v433 = vadd.f32 %v316, %v432
  %v434 = vpop.f32.mrb[0].mxu0
  %435 = vmatprep.mubr.bf16.mxu0 0
  %436 = vmatmul.mubr.bf16.gmra.mrb[0].mxu0 %v350
  %v437 = vpop.f32.mrb[0].mxu0
  %v438 = vadd.f32 %v316, %v437
  %v439 = vpop.f32.mrb[0].mxu0
  %v440 = vpop.f32.mrb[0].mxu0
  %v441 = vadd.f32 %v316, %v440
  %v442 = vpop.f32.mrb[0].mxu0
  %443 = vmatprep.mubr.bf16.mxu0 0
  %444 = vmatmul.mubr.bf16.gmra.mrb[0].mxu0 %v353
  %v445 = vpop.f32.mrb[0].mxu0
  %v446 = vadd.f32 %v316, %v445
  %v447 = vpop.f32.mrb[0].mxu0
  %v448 = vpop.f32.mrb[0].mxu0
  %v449 = vadd.f32 %v316, %v448
  %v450 = vpop.f32.mrb[0].mxu0
  %451 = vdwg.mxu0
  %v452 = vmax.f32 %v390, 0.0
  %v453 = vmax.f32 %v393, 0.0
  %v454 = vmax.f32 %v398, 0.0
  %v455 = vmax.f32 %v401, 0.0
  %v456 = vmax.f32 %v406, 0.0
  %v457 = vmax.f32 %v409, 0.0
  %v458 = vmax.f32 %v414, 0.0
  %v459 = vmax.f32 %v417, 0.0
  %v460 = vmax.f32 %v422, 0.0
  %v461 = vmax.f32 %v425, 0.0
  %v462 = vmax.f32 %v430, 0.0
  %v463 = vmax.f32 %v433, 0.0
  %v464 = vmax.f32 %v438, 0.0
  %v465 = vmax.f32 %v441, 0.0
  %v466 = vmax.f32 %v446, 0.0
  %v467 = vmax.f32 %v449, 0.0
  %v468 = vld [vmem:[%s6] sm:$0xf]
  %v469 = vld [vmem:[%s6 + $0x4] sm:$0xf]
  %v470 = vld [vmem:[%s6 + $0x8] sm:$0xf]
  %v471 = vld [vmem:[%s6 + $0xc] sm:$0xf]
  %v472 = vld [vmem:[%s7] sm:$0x1]
  %v473 = vpack.c.bf16 %v453, %v452
  %v474 = vpack.c.bf16 %v455, %v454
  %v475 = vpack.c.bf16 %v457, %v456
  %v476 = vpack.c.bf16 %v459, %v458
  %v477 = vpack.c.bf16 %v461, %v460
  %v478 = vpack.c.bf16 %v463, %v462
  %v479 = vpack.c.bf16 %v465, %v464
  %v480 = vpack.c.bf16 %v467, %v466
  %v482 = vlaneseq
  %v483 = vshrl.u32 %v482, 7
  %v484 = vsub.s32 0, %v483
  %v485 = vrot.slane %v472, %v484
  %v491 = vunpack.c.l.b16 %v468
  %v492 = vunpack.c.l.b16 %v469
  %v493 = vunpack.c.l.b16 %v470
  %v494 = vunpack.c.l.b16 %v471
  %v495 = vpack.c.b16 %v492, %v491
  %v496 = vpack.c.b16 %v494, %v493
  %v500 = vsel %vm330, %v473, 0
  %v503 = vsel %vm330, %v474, 0
  %v506 = vsel %vm330, %v475, 0
  %v509 = vsel %vm330, %v476, 0
  %v512 = vsel %vm330, %v477, 0
  %v515 = vsel %vm330, %v478, 0
  %v518 = vsel %vm330, %v479, 0
  %v521 = vsel %vm330, %v480, 0
  %523 = vmatprep.subr.bf16.mxu0 0
  %524 = vmatpush1.bf16.msra.mxu0 %v495
  %525 = vmatprep.subr.bf16.mxu0 0
  %526 = vmatpush1.bf16.msra.mxu0 %v496
  %527 = vmatprep.subr.bf16.mxu0 0
  %528 = vmatpush1.bf16.msra.mxu0 0
  %529 = vmatprep.subr.bf16.mxu0 0
  %530 = vmatpush1.bf16.msra.mxu0 0
  %531 = vmatprep.subr.bf16.mxu0 0
  %532 = vmatpush1.bf16.msra.mxu0 0
  %533 = vmatprep.subr.bf16.mxu0 0
  %534 = vmatpush1.bf16.msra.mxu0 0
  %535 = vmatprep.subr.bf16.mxu0 0
  %536 = vmatpush1.bf16.msra.mxu0 0
  %537 = vmatprep.subr.bf16.mxu0 0
  %538 = vmatpush1.bf16.msra.mxu0 0
  %539 = vmatprep.subr.bf16.mxu0 0
  %540 = vmatpush1.bf16.msra.mxu0 0
  %541 = vmatprep.subr.bf16.mxu0 0
  %542 = vmatpush1.bf16.msra.mxu0 0
  %543 = vmatprep.subr.bf16.mxu0 0
  %544 = vmatpush1.bf16.msra.mxu0 0
  %545 = vmatprep.subr.bf16.mxu0 0
  %546 = vmatpush1.bf16.msra.mxu0 0
  %547 = vmatprep.subr.bf16.mxu0 0
  %548 = vmatpush1.bf16.msra.mxu0 0
  %549 = vmatprep.subr.bf16.mxu0 0
  %550 = vmatpush1.bf16.msra.mxu0 0
  %551 = vmatprep.subr.bf16.mxu0 0
  %552 = vmatpush1.bf16.msra.mxu0 0
  %553 = vmatprep.subr.bf16.mxu0 0
  %554 = vmatpush1.bf16.msra.mxu0 0
  %555 = vmatprep.mubr.bf16.mxu0 0
  %556 = vmatmul.mubr.bf16.gmra.mrb[0].mxu0 %v500
  %v557 = vpop.f32.mrb[0].mxu0
  %v558 = vadd.f32 %v485, %v557
  %v559 = vpop.f32.mrb[0].mxu0
  %v560 = vpop.f32.mrb[0].mxu0
  %v561 = vadd.f32 %v485, %v560
  %v562 = vpop.f32.mrb[0].mxu0
  %563 = vmatprep.mubr.bf16.mxu0 0
  %564 = vmatmul.mubr.bf16.gmra.mrb[0].mxu0 %v503
  %v565 = vpop.f32.mrb[0].mxu0
  %v566 = vadd.f32 %v485, %v565
  %v567 = vpop.f32.mrb[0].mxu0
  %v568 = vpop.f32.mrb[0].mxu0
  %v569 = vadd.f32 %v485, %v568
  %v570 = vpop.f32.mrb[0].mxu0
  %571 = vmatprep.mubr.bf16.mxu0 0
  %572 = vmatmul.mubr.bf16.gmra.mrb[0].mxu0 %v506
  %v573 = vpop.f32.mrb[0].mxu0
  %v574 = vadd.f32 %v485, %v573
  %v575 = vpop.f32.mrb[0].mxu0
  %v576 = vpop.f32.mrb[0].mxu0
  %v577 = vadd.f32 %v485, %v576
  %v578 = vpop.f32.mrb[0].mxu0
  %579 = vmatprep.mubr.bf16.mxu0 0
  %580 = vmatmul.mubr.bf16.gmra.mrb[0].mxu0 %v509
  %v581 = vpop.f32.mrb[0].mxu0
  %v582 = vadd.f32 %v485, %v581
  %v583 = vpop.f32.mrb[0].mxu0
  %v584 = vpop.f32.mrb[0].mxu0
  %v585 = vadd.f32 %v485, %v584
  %v586 = vpop.f32.mrb[0].mxu0
  %587 = vmatprep.mubr.bf16.mxu0 0
  %588 = vmatmul.mubr.bf16.gmra.mrb[0].mxu0 %v512
  %v589 = vpop.f32.mrb[0].mxu0
  %v590 = vadd.f32 %v485, %v589
  %v591 = vpop.f32.mrb[0].mxu0
  %v592 = vpop.f32.mrb[0].mxu0
  %v593 = vadd.f32 %v485, %v592
  %v594 = vpop.f32.mrb[0].mxu0
  %595 = vmatprep.mubr.bf16.mxu0 0
  %596 = vmatmul.mubr.bf16.gmra.mrb[0].mxu0 %v515
  %v597 = vpop.f32.mrb[0].mxu0
  %v598 = vadd.f32 %v485, %v597
  %v599 = vpop.f32.mrb[0].mxu0
  %v600 = vpop.f32.mrb[0].mxu0
  %v601 = vadd.f32 %v485, %v600
  %v602 = vpop.f32.mrb[0].mxu0
  %603 = vmatprep.mubr.bf16.mxu0 0
  %604 = vmatmul.mubr.bf16.gmra.mrb[0].mxu0 %v518
  %v605 = vpop.f32.mrb[0].mxu0
  %v606 = vadd.f32 %v485, %v605
  %v607 = vpop.f32.mrb[0].mxu0
  %v608 = vpop.f32.mrb[0].mxu0
  %v609 = vadd.f32 %v485, %v608
  %v610 = vpop.f32.mrb[0].mxu0
  %611 = vmatprep.mubr.bf16.mxu0 0
  %612 = vmatmul.mubr.bf16.gmra.mrb[0].mxu0 %v521
  %v613 = vpop.f32.mrb[0].mxu0
  %v614 = vadd.f32 %v485, %v613
  %v615 = vpop.f32.mrb[0].mxu0
  %v616 = vpop.f32.mrb[0].mxu0
  %v617 = vadd.f32 %v485, %v616
  %v618 = vpop.f32.mrb[0].mxu0
  %619 = vdwg.mxu0
  %v620 = vmax.f32 %v558, 0.0
  %v621 = vmax.f32 %v561, 0.0
  %v622 = vmax.f32 %v566, 0.0
  %v623 = vmax.f32 %v569, 0.0
  %v624 = vmax.f32 %v574, 0.0
  %v625 = vmax.f32 %v577, 0.0
  %v626 = vmax.f32 %v582, 0.0
  %v627 = vmax.f32 %v585, 0.0
  %v628 = vmax.f32 %v590, 0.0
  %v629 = vmax.f32 %v593, 0.0
  %v630 = vmax.f32 %v598, 0.0
  %v631 = vmax.f32 %v601, 0.0
  %v632 = vmax.f32 %v606, 0.0
  %v633 = vmax.f32 %v609, 0.0
  %v634 = vmax.f32 %v614, 0.0
  %v635 = vmax.f32 %v617, 0.0
  %v636 = vld [vmem:[%s8] sm:$0xf]
  %v637 = vld [vmem:[%s8 + $0x4] sm:$0xf]
  %v638 = vld [vmem:[%s8 + $0x8] sm:$0xf]
  %v639 = vld [vmem:[%s8 + $0xc] sm:$0xf]
  %v640 = vld [vmem:[%s9] sm:$0x1]
  %v641 = vpack.c.bf16 %v621, %v620
  %v642 = vpack.c.bf16 %v623, %v622
  %v643 = vpack.c.bf16 %v625, %v624
  %v644 = vpack.c.bf16 %v627, %v626
  %v645 = vpack.c.bf16 %v629, %v628
  %v646 = vpack.c.bf16 %v631, %v630
  %v647 = vpack.c.bf16 %v633, %v632
  %v648 = vpack.c.bf16 %v635, %v634
  %v650 = vlaneseq
  %v651 = vshrl.u32 %v650, 7
  %v652 = vsub.s32 0, %v651
  %v653 = vrot.slane %v640, %v652
  %v659 = vunpack.c.l.b16 %v636
  %v660 = vunpack.c.l.b16 %v637
  %v661 = vunpack.c.l.b16 %v638
  %v662 = vunpack.c.l.b16 %v639
  %v663 = vpack.c.b16 %v660, %v659
  %v664 = vpack.c.b16 %v662, %v661
  %v668 = vsel %vm330, %v641, 0
  %v671 = vsel %vm330, %v642, 0
  %v674 = vsel %vm330, %v643, 0
  %v677 = vsel %vm330, %v644, 0
  %v680 = vsel %vm330, %v645, 0
  %v683 = vsel %vm330, %v646, 0
  %v686 = vsel %vm330, %v647, 0
  %v689 = vsel %vm330, %v648, 0
  %691 = vmatprep.subr.bf16.mxu0 0
  %692 = vmatpush1.bf16.msra.mxu0 %v663
  %693 = vmatprep.subr.bf16.mxu0 0
  %694 = vmatpush1.bf16.msra.mxu0 %v664
  %695 = vmatprep.subr.bf16.mxu0 0
  %696 = vmatpush1.bf16.msra.mxu0 0
  %697 = vmatprep.subr.bf16.mxu0 0
  %698 = vmatpush1.bf16.msra.mxu0 0
  %699 = vmatprep.subr.bf16.mxu0 0
  %700 = vmatpush1.bf16.msra.mxu0 0
  %701 = vmatprep.subr.bf16.mxu0 0
  %702 = vmatpush1.bf16.msra.mxu0 0
  %703 = vmatprep.subr.bf16.mxu0 0
  %704 = vmatpush1.bf16.msra.mxu0 0
  %705 = vmatprep.subr.bf16.mxu0 0
  %706 = vmatpush1.bf16.msra.mxu0 0
  %707 = vmatprep.subr.bf16.mxu0 0
  %708 = vmatpush1.bf16.msra.mxu0 0
  %709 = vmatprep.subr.bf16.mxu0 0
  %710 = vmatpush1.bf16.msra.mxu0 0
  %711 = vmatprep.subr.bf16.mxu0 0
  %712 = vmatpush1.bf16.msra.mxu0 0
  %713 = vmatprep.subr.bf16.mxu0 0
  %714 = vmatpush1.bf16.msra.mxu0 0
  %715 = vmatprep.subr.bf16.mxu0 0
  %716 = vmatpush1.bf16.msra.mxu0 0
  %717 = vmatprep.subr.bf16.mxu0 0
  %718 = vmatpush1.bf16.msra.mxu0 0
  %719 = vmatprep.subr.bf16.mxu0 0
  %720 = vmatpush1.bf16.msra.mxu0 0
  %721 = vmatprep.subr.bf16.mxu0 0
  %722 = vmatpush1.bf16.msra.mxu0 0
  %723 = vmatprep.mubr.bf16.mxu0 0
  %724 = vmatmul.mubr.bf16.gmra.mrb[0].mxu0 %v668
  %v725 = vpop.f32.mrb[0].mxu0
  %v726 = vadd.f32 %v653, %v725
  %v727 = vpop.f32.mrb[0].mxu0
  %v728 = vpop.f32.mrb[0].mxu0
  %v729 = vadd.f32 %v653, %v728
  %v730 = vpop.f32.mrb[0].mxu0
  %731 = vmatprep.mubr.bf16.mxu0 0
  %732 = vmatmul.mubr.bf16.gmra.mrb[0].mxu0 %v671
  %v733 = vpop.f32.mrb[0].mxu0
  %v734 = vadd.f32 %v653, %v733
  %v735 = vpop.f32.mrb[0].mxu0
  %v736 = vpop.f32.mrb[0].mxu0
  %v737 = vadd.f32 %v653, %v736
  %v738 = vpop.f32.mrb[0].mxu0
  %739 = vmatprep.mubr.bf16.mxu0 0
  %740 = vmatmul.mubr.bf16.gmra.mrb[0].mxu0 %v674
  %v741 = vpop.f32.mrb[0].mxu0
  %v742 = vadd.f32 %v653, %v741
  %v743 = vpop.f32.mrb[0].mxu0
  %v744 = vpop.f32.mrb[0].mxu0
  %v745 = vadd.f32 %v653, %v744
  %v746 = vpop.f32.mrb[0].mxu0
  %747 = vmatprep.mubr.bf16.mxu0 0
  %748 = vmatmul.mubr.bf16.gmra.mrb[0].mxu0 %v677
  %v749 = vpop.f32.mrb[0].mxu0
  %v750 = vadd.f32 %v653, %v749
  %v751 = vpop.f32.mrb[0].mxu0
  %v752 = vpop.f32.mrb[0].mxu0
  %v753 = vadd.f32 %v653, %v752
  %v754 = vpop.f32.mrb[0].mxu0
  %755 = vmatprep.mubr.bf16.mxu0 0
  %756 = vmatmul.mubr.bf16.gmra.mrb[0].mxu0 %v680
  %v757 = vpop.f32.mrb[0].mxu0
  %v758 = vadd.f32 %v653, %v757
  %v759 = vpop.f32.mrb[0].mxu0
  %v760 = vpop.f32.mrb[0].mxu0
  %v761 = vadd.f32 %v653, %v760
  %v762 = vpop.f32.mrb[0].mxu0
  %763 = vmatprep.mubr.bf16.mxu0 0
  %764 = vmatmul.mubr.bf16.gmra.mrb[0].mxu0 %v683
  %v765 = vpop.f32.mrb[0].mxu0
  %v766 = vadd.f32 %v653, %v765
  %v767 = vpop.f32.mrb[0].mxu0
  %v768 = vpop.f32.mrb[0].mxu0
  %v769 = vadd.f32 %v653, %v768
  %v770 = vpop.f32.mrb[0].mxu0
  %771 = vmatprep.mubr.bf16.mxu0 0
  %772 = vmatmul.mubr.bf16.gmra.mrb[0].mxu0 %v686
  %v773 = vpop.f32.mrb[0].mxu0
  %v774 = vadd.f32 %v653, %v773
  %v775 = vpop.f32.mrb[0].mxu0
  %v776 = vpop.f32.mrb[0].mxu0
  %v777 = vadd.f32 %v653, %v776
  %v778 = vpop.f32.mrb[0].mxu0
  %779 = vmatprep.mubr.bf16.mxu0 0
  %780 = vmatmul.mubr.bf16.gmra.mrb[0].mxu0 %v689
  %v781 = vpop.f32.mrb[0].mxu0
  %v782 = vadd.f32 %v653, %v781
  %v783 = vpop.f32.mrb[0].mxu0
  %v784 = vpop.f32.mrb[0].mxu0
  %v785 = vadd.f32 %v653, %v784
  %v786 = vpop.f32.mrb[0].mxu0
  %787 = vdwg.mxu0
  %v788 = vmax.f32 %v726, 0.0
  %v789 = vmax.f32 %v729, 0.0
  %v790 = vmax.f32 %v734, 0.0
  %v791 = vmax.f32 %v737, 0.0
  %v792 = vmax.f32 %v742, 0.0
  %v793 = vmax.f32 %v745, 0.0
  %v794 = vmax.f32 %v750, 0.0
  %v795 = vmax.f32 %v753, 0.0
  %v796 = vmax.f32 %v758, 0.0
  %v797 = vmax.f32 %v761, 0.0
  %v798 = vmax.f32 %v766, 0.0
  %v799 = vmax.f32 %v769, 0.0
  %v800 = vmax.f32 %v774, 0.0
  %v801 = vmax.f32 %v777, 0.0
  %v802 = vmax.f32 %v782, 0.0
  %v803 = vmax.f32 %v785, 0.0
  %v804 = vld [vmem:[%s10] sm:$0xf]
  %v805 = vld [vmem:[%s10 + $0x4] sm:$0xf]
  %v806 = vld [vmem:[%s10 + $0x8] sm:$0xf]
  %v807 = vld [vmem:[%s10 + $0xc] sm:$0xf]
  %v808 = vld [vmem:[%s11] sm:$0x1]
  %v809 = vpack.c.bf16 %v789, %v788
  %v810 = vpack.c.bf16 %v791, %v790
  %v811 = vpack.c.bf16 %v793, %v792
  %v812 = vpack.c.bf16 %v795, %v794
  %v813 = vpack.c.bf16 %v797, %v796
  %v814 = vpack.c.bf16 %v799, %v798
  %v815 = vpack.c.bf16 %v801, %v800
  %v816 = vpack.c.bf16 %v803, %v802
  %v818 = vlaneseq
  %v819 = vshrl.u32 %v818, 7
  %v820 = vsub.s32 0, %v819
  %v821 = vrot.slane %v808, %v820
  %v827 = vunpack.c.l.b16 %v804
  %v828 = vunpack.c.l.b16 %v805
  %v829 = vunpack.c.l.b16 %v806
  %v830 = vunpack.c.l.b16 %v807
  %v831 = vpack.c.b16 %v828, %v827
  %v832 = vpack.c.b16 %v830, %v829
  %v836 = vsel %vm330, %v809, 0
  %v839 = vsel %vm330, %v810, 0
  %v842 = vsel %vm330, %v811, 0
  %v845 = vsel %vm330, %v812, 0
  %v848 = vsel %vm330, %v813, 0
  %v851 = vsel %vm330, %v814, 0
  %v854 = vsel %vm330, %v815, 0
  %v857 = vsel %vm330, %v816, 0
  %859 = vmatprep.subr.bf16.mxu0 0
  %860 = vmatpush1.bf16.msra.mxu0 %v831
  %861 = vmatprep.subr.bf16.mxu0 0
  %862 = vmatpush1.bf16.msra.mxu0 %v832
  %863 = vmatprep.subr.bf16.mxu0 0
  %864 = vmatpush1.bf16.msra.mxu0 0
  %865 = vmatprep.subr.bf16.mxu0 0
  %866 = vmatpush1.bf16.msra.mxu0 0
  %867 = vmatprep.subr.bf16.mxu0 0
  %868 = vmatpush1.bf16.msra.mxu0 0
  %869 = vmatprep.subr.bf16.mxu0 0
  %870 = vmatpush1.bf16.msra.mxu0 0
  %871 = vmatprep.subr.bf16.mxu0 0
  %872 = vmatpush1.bf16.msra.mxu0 0
  %873 = vmatprep.subr.bf16.mxu0 0
  %874 = vmatpush1.bf16.msra.mxu0 0
  %875 = vmatprep.subr.bf16.mxu0 0
  %876 = vmatpush1.bf16.msra.mxu0 0
  %877 = vmatprep.subr.bf16.mxu0 0
  %878 = vmatpush1.bf16.msra.mxu0 0
  %879 = vmatprep.subr.bf16.mxu0 0
  %880 = vmatpush1.bf16.msra.mxu0 0
  %881 = vmatprep.subr.bf16.mxu0 0
  %882 = vmatpush1.bf16.msra.mxu0 0
  %883 = vmatprep.subr.bf16.mxu0 0
  %884 = vmatpush1.bf16.msra.mxu0 0
  %885 = vmatprep.subr.bf16.mxu0 0
  %886 = vmatpush1.bf16.msra.mxu0 0
  %887 = vmatprep.subr.bf16.mxu0 0
  %888 = vmatpush1.bf16.msra.mxu0 0
  %889 = vmatprep.subr.bf16.mxu0 0
  %890 = vmatpush1.bf16.msra.mxu0 0
  %891 = vmatprep.mubr.bf16.mxu0 0
  %892 = vmatmul.mubr.bf16.gmra.mrb[0].mxu0 %v836
  %v893 = vpop.f32.mrb[0].mxu0
  %v894 = vadd.f32 %v821, %v893
  %v895 = vpop.f32.mrb[0].mxu0
  %v896 = vpop.f32.mrb[0].mxu0
  %v897 = vadd.f32 %v821, %v896
  %v898 = vpop.f32.mrb[0].mxu0
  %899 = vmatprep.mubr.bf16.mxu0 0
  %900 = vmatmul.mubr.bf16.gmra.mrb[0].mxu0 %v839
  %v901 = vpop.f32.mrb[0].mxu0
  %v902 = vadd.f32 %v821, %v901
  %v903 = vpop.f32.mrb[0].mxu0
  %v904 = vpop.f32.mrb[0].mxu0
  %v905 = vadd.f32 %v821, %v904
  %v906 = vpop.f32.mrb[0].mxu0
  %907 = vmatprep.mubr.bf16.mxu0 0
  %908 = vmatmul.mubr.bf16.gmra.mrb[0].mxu0 %v842
  %v909 = vpop.f32.mrb[0].mxu0
  %v910 = vadd.f32 %v821, %v909
  %v911 = vpop.f32.mrb[0].mxu0
  %v912 = vpop.f32.mrb[0].mxu0
  %v913 = vadd.f32 %v821, %v912
  %v914 = vpop.f32.mrb[0].mxu0
  %915 = vmatprep.mubr.bf16.mxu0 0
  %916 = vmatmul.mubr.bf16.gmra.mrb[0].mxu0 %v845
  %v917 = vpop.f32.mrb[0].mxu0
  %v918 = vadd.f32 %v821, %v917
  %v919 = vpop.f32.mrb[0].mxu0
  %v920 = vpop.f32.mrb[0].mxu0
  %v921 = vadd.f32 %v821, %v920
  %v922 = vpop.f32.mrb[0].mxu0
  %923 = vmatprep.mubr.bf16.mxu0 0
  %924 = vmatmul.mubr.bf16.gmra.mrb[0].mxu0 %v848
  %v925 = vpop.f32.mrb[0].mxu0
  %v926 = vadd.f32 %v821, %v925
  %v927 = vpop.f32.mrb[0].mxu0
  %v928 = vpop.f32.mrb[0].mxu0
  %v929 = vadd.f32 %v821, %v928
  %v930 = vpop.f32.mrb[0].mxu0
  %931 = vmatprep.mubr.bf16.mxu0 0
  %932 = vmatmul.mubr.bf16.gmra.mrb[0].mxu0 %v851
  %v933 = vpop.f32.mrb[0].mxu0
  %v934 = vadd.f32 %v821, %v933
  %v935 = vpop.f32.mrb[0].mxu0
  %v936 = vpop.f32.mrb[0].mxu0
  %v937 = vadd.f32 %v821, %v936
  %v938 = vpop.f32.mrb[0].mxu0
  %939 = vmatprep.mubr.bf16.mxu0 0
  %940 = vmatmul.mubr.bf16.gmra.mrb[0].mxu0 %v854
  %v941 = vpop.f32.mrb[0].mxu0
  %v942 = vadd.f32 %v821, %v941
  %v943 = vpop.f32.mrb[0].mxu0
  %v944 = vpop.f32.mrb[0].mxu0
  %v945 = vadd.f32 %v821, %v944
  %v946 = vpop.f32.mrb[0].mxu0
  %947 = vmatprep.mubr.bf16.mxu0 0
  %948 = vmatmul.mubr.bf16.gmra.mrb[0].mxu0 %v857
  %v949 = vpop.f32.mrb[0].mxu0
  %v950 = vadd.f32 %v821, %v949
  %v951 = vpop.f32.mrb[0].mxu0
  %v952 = vpop.f32.mrb[0].mxu0
  %v953 = vadd.f32 %v821, %v952
  %v954 = vpop.f32.mrb[0].mxu0
  %955 = vdwg.mxu0
  %v956 = vmax.f32 %v894, 0.0
  %v957 = vmax.f32 %v897, 0.0
  %v958 = vmax.f32 %v902, 0.0
  %v959 = vmax.f32 %v905, 0.0
  %v960 = vmax.f32 %v910, 0.0
  %v961 = vmax.f32 %v913, 0.0
  %v962 = vmax.f32 %v918, 0.0
  %v963 = vmax.f32 %v921, 0.0
  %v964 = vmax.f32 %v926, 0.0
  %v965 = vmax.f32 %v929, 0.0
  %v966 = vmax.f32 %v934, 0.0
  %v967 = vmax.f32 %v937, 0.0
  %v968 = vmax.f32 %v942, 0.0
  %v969 = vmax.f32 %v945, 0.0
  %v970 = vmax.f32 %v950, 0.0
  %v971 = vmax.f32 %v953, 0.0
  %v972 = vld [vmem:[%s12] sm:$0xf]
  %v973 = vld [vmem:[%s12 + $0x4] sm:$0xf]
  %v974 = vld [vmem:[%s12 + $0x8] sm:$0xf]
  %v975 = vld [vmem:[%s12 + $0xc] sm:$0x3]
  %v976 = vld [vmem:[%s13] sm:$0xf]
  %v977 = vld [vmem:[%s13 + $0x4] sm:$0xf]
  %v978 = vld [vmem:[%s13 + $0x8] sm:$0xf]
  %v979 = vld [vmem:[%s13 + $0xc] sm:$0xf]
  %v980 = vld [vmem:[%s14] sm:$0x1]
  %v981 = vpack.c.bf16 %v957, %v956
  %v982 = vpack.c.bf16 %v959, %v958
  %v983 = vpack.c.bf16 %v961, %v960
  %v984 = vpack.c.bf16 %v963, %v962
  %v985 = vpack.c.bf16 %v965, %v964
  %v986 = vpack.c.bf16 %v967, %v966
  %v987 = vpack.c.bf16 %v969, %v968
  %v988 = vpack.c.bf16 %v971, %v970
  %v993 = vunpack.c.l.b16 %v976
  %v994 = vunpack.c.l.b16 %v977
  %v995 = vunpack.c.l.b16 %v978
  %v996 = vunpack.c.l.b16 %v979
  %v997 = vpack.c.b16 %v994, %v993
  %v998 = vpack.c.b16 %v996, %v995
  %v1002 = vsel %vm330, %v981, 0
  %v1005 = vsel %vm330, %v982, 0
  %v1008 = vsel %vm330, %v983, 0
  %v1011 = vsel %vm330, %v984, 0
  %v1014 = vsel %vm330, %v985, 0
  %v1017 = vsel %vm330, %v986, 0
  %v1020 = vsel %vm330, %v987, 0
  %v1023 = vsel %vm330, %v988, 0
  %1025 = vmatprep.subr.bf16.mxu0 0
  %1026 = vmatpush1.bf16.msra.mxu0 %v997
  %1027 = vmatprep.subr.bf16.mxu0 0
  %1028 = vmatpush1.bf16.msra.mxu0 %v998
  %1029 = vmatprep.subr.bf16.mxu0 0
  %1030 = vmatpush1.bf16.msra.mxu0 0
  %1031 = vmatprep.subr.bf16.mxu0 0
  %1032 = vmatpush1.bf16.msra.mxu0 0
  %1033 = vmatprep.subr.bf16.mxu0 0
  %1034 = vmatpush1.bf16.msra.mxu0 0
  %1035 = vmatprep.subr.bf16.mxu0 0
  %1036 = vmatpush1.bf16.msra.mxu0 0
  %1037 = vmatprep.subr.bf16.mxu0 0
  %1038 = vmatpush1.bf16.msra.mxu0 0
  %1039 = vmatprep.subr.bf16.mxu0 0
  %1040 = vmatpush1.bf16.msra.mxu0 0
  %1041 = vmatprep.subr.bf16.mxu0 0
  %1042 = vmatpush1.bf16.msra.mxu0 0
  %1043 = vmatprep.subr.bf16.mxu0 0
  %1044 = vmatpush1.bf16.msra.mxu0 0
  %1045 = vmatprep.subr.bf16.mxu0 0
  %1046 = vmatpush1.bf16.msra.mxu0 0
  %1047 = vmatprep.subr.bf16.mxu0 0
  %1048 = vmatpush1.bf16.msra.mxu0 0
  %1049 = vmatprep.subr.bf16.mxu0 0
  %1050 = vmatpush1.bf16.msra.mxu0 0
  %1051 = vmatprep.subr.bf16.mxu0 0
  %1052 = vmatpush1.bf16.msra.mxu0 0
  %1053 = vmatprep.subr.bf16.mxu0 0
  %1054 = vmatpush1.bf16.msra.mxu0 0
  %1055 = vmatprep.subr.bf16.mxu0 0
  %1056 = vmatpush1.bf16.msra.mxu0 0
  %1057 = vmatprep.mubr.bf16.mxu0 0
  %1058 = vmatmul.mubr.bf16.gmra.mrb[0].mxu0 %v1002
  %v1059 = vpop.f32.mrb[0].mxu0
  %v1060 = vadd.f32 0.0, %v1059
  %v1061 = vpop.f32.mrb[0].mxu0
  %v1062 = vpop.f32.mrb[0].mxu0
  %v1063 = vadd.f32 0.0, %v1062
  %v1064 = vpop.f32.mrb[0].mxu0
  %1065 = vmatprep.mubr.bf16.mxu0 0
  %1066 = vmatmul.mubr.bf16.gmra.mrb[0].mxu0 %v1005
  %v1067 = vpop.f32.mrb[0].mxu0
  %v1068 = vadd.f32 0.0, %v1067
  %v1069 = vpop.f32.mrb[0].mxu0
  %v1070 = vpop.f32.mrb[0].mxu0
  %v1071 = vadd.f32 0.0, %v1070
  %v1072 = vpop.f32.mrb[0].mxu0
  %1073 = vmatprep.mubr.bf16.mxu0 0
  %1074 = vmatmul.mubr.bf16.gmra.mrb[0].mxu0 %v1008
  %v1075 = vpop.f32.mrb[0].mxu0
  %v1076 = vadd.f32 0.0, %v1075
  %v1077 = vpop.f32.mrb[0].mxu0
  %v1078 = vpop.f32.mrb[0].mxu0
  %v1079 = vadd.f32 0.0, %v1078
  %v1080 = vpop.f32.mrb[0].mxu0
  %1081 = vmatprep.mubr.bf16.mxu0 0
  %1082 = vmatmul.mubr.bf16.gmra.mrb[0].mxu0 %v1011
  %v1083 = vpop.f32.mrb[0].mxu0
  %v1084 = vadd.f32 0.0, %v1083
  %v1085 = vpop.f32.mrb[0].mxu0
  %v1086 = vpop.f32.mrb[0].mxu0
  %v1087 = vadd.f32 0.0, %v1086
  %v1088 = vpop.f32.mrb[0].mxu0
  %1089 = vmatprep.mubr.bf16.mxu0 0
  %1090 = vmatmul.mubr.bf16.gmra.mrb[0].mxu0 %v1014
  %v1091 = vpop.f32.mrb[0].mxu0
  %v1092 = vadd.f32 0.0, %v1091
  %v1093 = vpop.f32.mrb[0].mxu0
  %v1094 = vpop.f32.mrb[0].mxu0
  %v1095 = vadd.f32 0.0, %v1094
  %v1096 = vpop.f32.mrb[0].mxu0
  %1097 = vmatprep.mubr.bf16.mxu0 0
  %1098 = vmatmul.mubr.bf16.gmra.mrb[0].mxu0 %v1017
  %v1099 = vpop.f32.mrb[0].mxu0
  %v1100 = vadd.f32 0.0, %v1099
  %v1101 = vpop.f32.mrb[0].mxu0
  %v1102 = vpop.f32.mrb[0].mxu0
  %v1103 = vadd.f32 0.0, %v1102
  %v1104 = vpop.f32.mrb[0].mxu0
  %1105 = vmatprep.mubr.bf16.mxu0 0
  %1106 = vmatmul.mubr.bf16.gmra.mrb[0].mxu0 %v1020
  %v1107 = vpop.f32.mrb[0].mxu0
  %v1108 = vadd.f32 0.0, %v1107
  %v1109 = vpop.f32.mrb[0].mxu0
  %v1110 = vpop.f32.mrb[0].mxu0
  %v1111 = vadd.f32 0.0, %v1110
  %v1112 = vpop.f32.mrb[0].mxu0
  %1113 = vmatprep.mubr.bf16.mxu0 0
  %1114 = vmatmul.mubr.bf16.gmra.mrb[0].mxu0 %v1023
  %v1115 = vpop.f32.mrb[0].mxu0
  %v1116 = vadd.f32 0.0, %v1115
  %v1117 = vpop.f32.mrb[0].mxu0
  %v1118 = vpop.f32.mrb[0].mxu0
  %v1119 = vadd.f32 0.0, %v1118
  %v1120 = vpop.f32.mrb[0].mxu0
  %1121 = vdwg.mxu0
  %v1126 = vunpack.c.l.b16 %v972
  %v1127 = vunpack.c.l.b16 %v973
  %v1128 = vunpack.c.l.b16 %v974
  %v1129 = vunpack.c.l.b16 %v975
  %v1130 = vpack.c.b16 %v1127, %v1126
  %v1131 = vpack.c.b16 %v1129, %v1128
  %v1134 = vand.u32 %v1131, %v182
  %1136 = vmatprep.subr.bf16.mxu0 0
  %1137 = vmatpush1.bf16.msra.mxu0 %v1130
  %1138 = vmatprep.subr.bf16.mxu0 0
  %1139 = vmatpush1.bf16.msra.mxu0 %v1134
  %1140 = vmatprep.subr.bf16.mxu0 0
  %1141 = vmatpush1.bf16.msra.mxu0 0
  %1142 = vmatprep.subr.bf16.mxu0 0
  %1143 = vmatpush1.bf16.msra.mxu0 0
  %1144 = vmatprep.subr.bf16.mxu0 0
  %1145 = vmatpush1.bf16.msra.mxu0 0
  %1146 = vmatprep.subr.bf16.mxu0 0
  %1147 = vmatpush1.bf16.msra.mxu0 0
  %1148 = vmatprep.subr.bf16.mxu0 0
  %1149 = vmatpush1.bf16.msra.mxu0 0
  %1150 = vmatprep.subr.bf16.mxu0 0
  %1151 = vmatpush1.bf16.msra.mxu0 0
  %1152 = vmatprep.subr.bf16.mxu0 0
  %1153 = vmatpush1.bf16.msra.mxu0 0
  %1154 = vmatprep.subr.bf16.mxu0 0
  %1155 = vmatpush1.bf16.msra.mxu0 0
  %1156 = vmatprep.subr.bf16.mxu0 0
  %1157 = vmatpush1.bf16.msra.mxu0 0
  %1158 = vmatprep.subr.bf16.mxu0 0
  %1159 = vmatpush1.bf16.msra.mxu0 0
  %1160 = vmatprep.subr.bf16.mxu0 0
  %1161 = vmatpush1.bf16.msra.mxu0 0
  %1162 = vmatprep.subr.bf16.mxu0 0
  %1163 = vmatpush1.bf16.msra.mxu0 0
  %1164 = vmatprep.subr.bf16.mxu0 0
  %1165 = vmatpush1.bf16.msra.mxu0 0
  %1166 = vmatprep.subr.bf16.mxu0 0
  %1167 = vmatpush1.bf16.msra.mxu0 0
  %1168 = vmatprep.mubr.bf16.mxu0 0
  %1169 = vmatmul.mubr.bf16.gmra.mrb[0].mxu0 %v156
  %v1170 = vpop.f32.mrb[0].mxu0
  %v1171 = vadd.f32 %v1060, %v1170
  %v1172 = vpop.f32.mrb[0].mxu0
  %v1173 = vpop.f32.mrb[0].mxu0
  %v1174 = vadd.f32 %v1063, %v1173
  %v1175 = vpop.f32.mrb[0].mxu0
  %1176 = vmatprep.mubr.bf16.mxu0 0
  %1177 = vmatmul.mubr.bf16.gmra.mrb[0].mxu0 %v159
  %v1178 = vpop.f32.mrb[0].mxu0
  %v1179 = vadd.f32 %v1068, %v1178
  %v1180 = vpop.f32.mrb[0].mxu0
  %v1181 = vpop.f32.mrb[0].mxu0
  %v1182 = vadd.f32 %v1071, %v1181
  %v1183 = vpop.f32.mrb[0].mxu0
  %1184 = vmatprep.mubr.bf16.mxu0 0
  %1185 = vmatmul.mubr.bf16.gmra.mrb[0].mxu0 %v162
  %v1186 = vpop.f32.mrb[0].mxu0
  %v1187 = vadd.f32 %v1076, %v1186
  %v1188 = vpop.f32.mrb[0].mxu0
  %v1189 = vpop.f32.mrb[0].mxu0
  %v1190 = vadd.f32 %v1079, %v1189
  %v1191 = vpop.f32.mrb[0].mxu0
  %1192 = vmatprep.mubr.bf16.mxu0 0
  %1193 = vmatmul.mubr.bf16.gmra.mrb[0].mxu0 %v165
  %v1194 = vpop.f32.mrb[0].mxu0
  %v1195 = vadd.f32 %v1084, %v1194
  %v1196 = vpop.f32.mrb[0].mxu0
  %v1197 = vpop.f32.mrb[0].mxu0
  %v1198 = vadd.f32 %v1087, %v1197
  %v1199 = vpop.f32.mrb[0].mxu0
  %1200 = vmatprep.mubr.bf16.mxu0 0
  %1201 = vmatmul.mubr.bf16.gmra.mrb[0].mxu0 %v168
  %v1202 = vpop.f32.mrb[0].mxu0
  %v1203 = vadd.f32 %v1092, %v1202
  %v1204 = vpop.f32.mrb[0].mxu0
  %v1205 = vpop.f32.mrb[0].mxu0
  %v1206 = vadd.f32 %v1095, %v1205
  %v1207 = vpop.f32.mrb[0].mxu0
  %1208 = vmatprep.mubr.bf16.mxu0 0
  %1209 = vmatmul.mubr.bf16.gmra.mrb[0].mxu0 %v171
  %v1210 = vpop.f32.mrb[0].mxu0
  %v1211 = vadd.f32 %v1100, %v1210
  %v1212 = vpop.f32.mrb[0].mxu0
  %v1213 = vpop.f32.mrb[0].mxu0
  %v1214 = vadd.f32 %v1103, %v1213
  %v1215 = vpop.f32.mrb[0].mxu0
  %1216 = vmatprep.mubr.bf16.mxu0 0
  %1217 = vmatmul.mubr.bf16.gmra.mrb[0].mxu0 %v174
  %v1218 = vpop.f32.mrb[0].mxu0
  %v1219 = vadd.f32 %v1108, %v1218
  %v1220 = vpop.f32.mrb[0].mxu0
  %v1221 = vpop.f32.mrb[0].mxu0
  %v1222 = vadd.f32 %v1111, %v1221
  %v1223 = vpop.f32.mrb[0].mxu0
  %1224 = vmatprep.mubr.bf16.mxu0 0
  %1225 = vmatmul.mubr.bf16.gmra.mrb[0].mxu0 %v177
  %v1226 = vpop.f32.mrb[0].mxu0
  %v1227 = vadd.f32 %v1116, %v1226
  %v1228 = vpop.f32.mrb[0].mxu0
  %v1229 = vpop.f32.mrb[0].mxu0
  %v1230 = vadd.f32 %v1119, %v1229
  %v1231 = vpop.f32.mrb[0].mxu0
  %1232 = vdwg.mxu0
  %v1234 = vlaneseq
  %v1235 = vshrl.u32 %v1234, 7
  %v1236 = vsub.s32 0, %v1235
  %v1237 = vrot.slane %v980, %v1236
  %v1239 = vadd.f32 %v1171, %v1237
  %v1240 = vadd.f32 %v1174, %v1237
  %v1241 = vadd.f32 %v1179, %v1237
  %v1242 = vadd.f32 %v1182, %v1237
  %v1243 = vadd.f32 %v1187, %v1237
  %v1244 = vadd.f32 %v1190, %v1237
  %v1245 = vadd.f32 %v1195, %v1237
  %v1246 = vadd.f32 %v1198, %v1237
  %v1247 = vadd.f32 %v1203, %v1237
  %v1248 = vadd.f32 %v1206, %v1237
  %v1249 = vadd.f32 %v1211, %v1237
  %v1250 = vadd.f32 %v1214, %v1237
  %v1251 = vadd.f32 %v1219, %v1237
  %v1252 = vadd.f32 %v1222, %v1237
  %v1253 = vadd.f32 %v1227, %v1237
  %v1254 = vadd.f32 %v1230, %v1237
  %v1255 = vmax.f32 %v1239, 0.0
  %v1256 = vmax.f32 %v1240, 0.0
  %v1257 = vmax.f32 %v1241, 0.0
  %v1258 = vmax.f32 %v1242, 0.0
  %v1259 = vmax.f32 %v1243, 0.0
  %v1260 = vmax.f32 %v1244, 0.0
  %v1261 = vmax.f32 %v1245, 0.0
  %v1262 = vmax.f32 %v1246, 0.0
  %v1263 = vmax.f32 %v1247, 0.0
  %v1264 = vmax.f32 %v1248, 0.0
  %v1265 = vmax.f32 %v1249, 0.0
  %v1266 = vmax.f32 %v1250, 0.0
  %v1267 = vmax.f32 %v1251, 0.0
  %v1268 = vmax.f32 %v1252, 0.0
  %v1269 = vmax.f32 %v1253, 0.0
  %v1270 = vmax.f32 %v1254, 0.0
  %v1271 = vld [vmem:[%s15] sm:$0xf]
  %v1272 = vld [vmem:[%s15 + $0x4] sm:$0xf]
  %v1273 = vld [vmem:[%s15 + $0x8] sm:$0xf]
  %v1274 = vld [vmem:[%s15 + $0xc] sm:$0xf]
  %v1275 = vld [vmem:[%s16] sm:$0x1]
  %v1276 = vpack.c.bf16 %v1256, %v1255
  %v1277 = vpack.c.bf16 %v1258, %v1257
  %v1278 = vpack.c.bf16 %v1260, %v1259
  %v1279 = vpack.c.bf16 %v1262, %v1261
  %v1280 = vpack.c.bf16 %v1264, %v1263
  %v1281 = vpack.c.bf16 %v1266, %v1265
  %v1282 = vpack.c.bf16 %v1268, %v1267
  %v1283 = vpack.c.bf16 %v1270, %v1269
  %v1285 = vlaneseq
  %v1286 = vshrl.u32 %v1285, 7
  %v1287 = vsub.s32 0, %v1286
  %v1288 = vrot.slane %v1275, %v1287
  %v1294 = vunpack.c.l.b16 %v1271
  %v1295 = vunpack.c.l.b16 %v1272
  %v1296 = vunpack.c.l.b16 %v1273
  %v1297 = vunpack.c.l.b16 %v1274
  %v1298 = vpack.c.b16 %v1295, %v1294
  %v1299 = vpack.c.b16 %v1297, %v1296
  %v1303 = vsel %vm330, %v1276, 0
  %v1306 = vsel %vm330, %v1277, 0
  %v1309 = vsel %vm330, %v1278, 0
  %v1312 = vsel %vm330, %v1279, 0
  %v1315 = vsel %vm330, %v1280, 0
  %v1318 = vsel %vm330, %v1281, 0
  %v1321 = vsel %vm330, %v1282, 0
  %v1324 = vsel %vm330, %v1283, 0
  %1326 = vmatprep.subr.bf16.mxu0 0
  %1327 = vmatpush1.bf16.msra.mxu0 %v1298
  %1328 = vmatprep.subr.bf16.mxu0 0
  %1329 = vmatpush1.bf16.msra.mxu0 %v1299
  %1330 = vmatprep.subr.bf16.mxu0 0
  %1331 = vmatpush1.bf16.msra.mxu0 0
  %1332 = vmatprep.subr.bf16.mxu0 0
  %1333 = vmatpush1.bf16.msra.mxu0 0
  %1334 = vmatprep.subr.bf16.mxu0 0
  %1335 = vmatpush1.bf16.msra.mxu0 0
  %1336 = vmatprep.subr.bf16.mxu0 0
  %1337 = vmatpush1.bf16.msra.mxu0 0
  %1338 = vmatprep.subr.bf16.mxu0 0
  %1339 = vmatpush1.bf16.msra.mxu0 0
  %1340 = vmatprep.subr.bf16.mxu0 0
  %1341 = vmatpush1.bf16.msra.mxu0 0
  %1342 = vmatprep.subr.bf16.mxu0 0
  %1343 = vmatpush1.bf16.msra.mxu0 0
  %1344 = vmatprep.subr.bf16.mxu0 0
  %1345 = vmatpush1.bf16.msra.mxu0 0
  %1346 = vmatprep.subr.bf16.mxu0 0
  %1347 = vmatpush1.bf16.msra.mxu0 0
  %1348 = vmatprep.subr.bf16.mxu0 0
  %1349 = vmatpush1.bf16.msra.mxu0 0
  %1350 = vmatprep.subr.bf16.mxu0 0
  %1351 = vmatpush1.bf16.msra.mxu0 0
  %1352 = vmatprep.subr.bf16.mxu0 0
  %1353 = vmatpush1.bf16.msra.mxu0 0
  %1354 = vmatprep.subr.bf16.mxu0 0
  %1355 = vmatpush1.bf16.msra.mxu0 0
  %1356 = vmatprep.subr.bf16.mxu0 0
  %1357 = vmatpush1.bf16.msra.mxu0 0
  %1358 = vmatprep.mubr.bf16.mxu0 0
  %1359 = vmatmul.mubr.bf16.gmra.mrb[0].mxu0 %v1303
  %v1360 = vpop.f32.mrb[0].mxu0
  %v1361 = vadd.f32 %v1288, %v1360
  %v1362 = vpop.f32.mrb[0].mxu0
  %v1363 = vpop.f32.mrb[0].mxu0
  %v1364 = vadd.f32 %v1288, %v1363
  %v1365 = vpop.f32.mrb[0].mxu0
  %1366 = vmatprep.mubr.bf16.mxu0 0
  %1367 = vmatmul.mubr.bf16.gmra.mrb[0].mxu0 %v1306
  %v1368 = vpop.f32.mrb[0].mxu0
  %v1369 = vadd.f32 %v1288, %v1368
  %v1370 = vpop.f32.mrb[0].mxu0
  %v1371 = vpop.f32.mrb[0].mxu0
  %v1372 = vadd.f32 %v1288, %v1371
  %v1373 = vpop.f32.mrb[0].mxu0
  %1374 = vmatprep.mubr.bf16.mxu0 0
  %1375 = vmatmul.mubr.bf16.gmra.mrb[0].mxu0 %v1309
  %v1376 = vpop.f32.mrb[0].mxu0
  %v1377 = vadd.f32 %v1288, %v1376
  %v1378 = vpop.f32.mrb[0].mxu0
  %v1379 = vpop.f32.mrb[0].mxu0
  %v1380 = vadd.f32 %v1288, %v1379
  %v1381 = vpop.f32.mrb[0].mxu0
  %1382 = vmatprep.mubr.bf16.mxu0 0
  %1383 = vmatmul.mubr.bf16.gmra.mrb[0].mxu0 %v1312
  %v1384 = vpop.f32.mrb[0].mxu0
  %v1385 = vadd.f32 %v1288, %v1384
  %v1386 = vpop.f32.mrb[0].mxu0
  %v1387 = vpop.f32.mrb[0].mxu0
  %v1388 = vadd.f32 %v1288, %v1387
  %v1389 = vpop.f32.mrb[0].mxu0
  %1390 = vmatprep.mubr.bf16.mxu0 0
  %1391 = vmatmul.mubr.bf16.gmra.mrb[0].mxu0 %v1315
  %v1392 = vpop.f32.mrb[0].mxu0
  %v1393 = vadd.f32 %v1288, %v1392
  %v1394 = vpop.f32.mrb[0].mxu0
  %v1395 = vpop.f32.mrb[0].mxu0
  %v1396 = vadd.f32 %v1288, %v1395
  %v1397 = vpop.f32.mrb[0].mxu0
  %1398 = vmatprep.mubr.bf16.mxu0 0
  %1399 = vmatmul.mubr.bf16.gmra.mrb[0].mxu0 %v1318
  %v1400 = vpop.f32.mrb[0].mxu0
  %v1401 = vadd.f32 %v1288, %v1400
  %v1402 = vpop.f32.mrb[0].mxu0
  %v1403 = vpop.f32.mrb[0].mxu0
  %v1404 = vadd.f32 %v1288, %v1403
  %v1405 = vpop.f32.mrb[0].mxu0
  %1406 = vmatprep.mubr.bf16.mxu0 0
  %1407 = vmatmul.mubr.bf16.gmra.mrb[0].mxu0 %v1321
  %v1408 = vpop.f32.mrb[0].mxu0
  %v1409 = vadd.f32 %v1288, %v1408
  %v1410 = vpop.f32.mrb[0].mxu0
  %v1411 = vpop.f32.mrb[0].mxu0
  %v1412 = vadd.f32 %v1288, %v1411
  %v1413 = vpop.f32.mrb[0].mxu0
  %1414 = vmatprep.mubr.bf16.mxu0 0
  %1415 = vmatmul.mubr.bf16.gmra.mrb[0].mxu0 %v1324
  %v1416 = vpop.f32.mrb[0].mxu0
  %v1417 = vadd.f32 %v1288, %v1416
  %v1418 = vpop.f32.mrb[0].mxu0
  %v1419 = vpop.f32.mrb[0].mxu0
  %v1420 = vadd.f32 %v1288, %v1419
  %v1421 = vpop.f32.mrb[0].mxu0
  %1422 = vdwg.mxu0
  %v1423 = vmax.f32 %v1361, 0.0
  %v1424 = vmax.f32 %v1364, 0.0
  %v1425 = vmax.f32 %v1369, 0.0
  %v1426 = vmax.f32 %v1372, 0.0
  %v1427 = vmax.f32 %v1377, 0.0
  %v1428 = vmax.f32 %v1380, 0.0
  %v1429 = vmax.f32 %v1385, 0.0
  %v1430 = vmax.f32 %v1388, 0.0
  %v1431 = vmax.f32 %v1393, 0.0
  %v1432 = vmax.f32 %v1396, 0.0
  %v1433 = vmax.f32 %v1401, 0.0
  %v1434 = vmax.f32 %v1404, 0.0
  %v1435 = vmax.f32 %v1409, 0.0
  %v1436 = vmax.f32 %v1412, 0.0
  %v1437 = vmax.f32 %v1417, 0.0
  %v1438 = vmax.f32 %v1420, 0.0
  %v1439 = vld [vmem:[%s17] sm:$0xf]
  %v1440 = vld [vmem:[%s17 + $0x4] sm:$0xf]
  %v1441 = vld [vmem:[%s17 + $0x8] sm:$0xf]
  %v1442 = vld [vmem:[%s17 + $0xc] sm:$0xf]
  %v1443 = vld [vmem:[%s18] sm:$0x1]
  %v1444 = vpack.c.bf16 %v1424, %v1423
  %v1445 = vpack.c.bf16 %v1426, %v1425
  %v1446 = vpack.c.bf16 %v1428, %v1427
  %v1447 = vpack.c.bf16 %v1430, %v1429
  %v1448 = vpack.c.bf16 %v1432, %v1431
  %v1449 = vpack.c.bf16 %v1434, %v1433
  %v1450 = vpack.c.bf16 %v1436, %v1435
  %v1451 = vpack.c.bf16 %v1438, %v1437
  %v1453 = vlaneseq
  %v1454 = vshrl.u32 %v1453, 7
  %v1455 = vsub.s32 0, %v1454
  %v1456 = vrot.slane %v1443, %v1455
  %v1462 = vunpack.c.l.b16 %v1439
  %v1463 = vunpack.c.l.b16 %v1440
  %v1464 = vunpack.c.l.b16 %v1441
  %v1465 = vunpack.c.l.b16 %v1442
  %v1466 = vpack.c.b16 %v1463, %v1462
  %v1467 = vpack.c.b16 %v1465, %v1464
  %v1471 = vsel %vm330, %v1444, 0
  %v1474 = vsel %vm330, %v1445, 0
  %v1477 = vsel %vm330, %v1446, 0
  %v1480 = vsel %vm330, %v1447, 0
  %v1483 = vsel %vm330, %v1448, 0
  %v1486 = vsel %vm330, %v1449, 0
  %v1489 = vsel %vm330, %v1450, 0
  %v1492 = vsel %vm330, %v1451, 0
  %1494 = vmatprep.subr.bf16.mxu0 0
  %1495 = vmatpush1.bf16.msra.mxu0 %v1466
  %1496 = vmatprep.subr.bf16.mxu0 0
  %1497 = vmatpush1.bf16.msra.mxu0 %v1467
  %1498 = vmatprep.subr.bf16.mxu0 0
  %1499 = vmatpush1.bf16.msra.mxu0 0
  %1500 = vmatprep.subr.bf16.mxu0 0
  %1501 = vmatpush1.bf16.msra.mxu0 0
  %1502 = vmatprep.subr.bf16.mxu0 0
  %1503 = vmatpush1.bf16.msra.mxu0 0
  %1504 = vmatprep.subr.bf16.mxu0 0
  %1505 = vmatpush1.bf16.msra.mxu0 0
  %1506 = vmatprep.subr.bf16.mxu0 0
  %1507 = vmatpush1.bf16.msra.mxu0 0
  %1508 = vmatprep.subr.bf16.mxu0 0
  %1509 = vmatpush1.bf16.msra.mxu0 0
  %1510 = vmatprep.subr.bf16.mxu0 0
  %1511 = vmatpush1.bf16.msra.mxu0 0
  %1512 = vmatprep.subr.bf16.mxu0 0
  %1513 = vmatpush1.bf16.msra.mxu0 0
  %1514 = vmatprep.subr.bf16.mxu0 0
  %1515 = vmatpush1.bf16.msra.mxu0 0
  %1516 = vmatprep.subr.bf16.mxu0 0
  %1517 = vmatpush1.bf16.msra.mxu0 0
  %1518 = vmatprep.subr.bf16.mxu0 0
  %1519 = vmatpush1.bf16.msra.mxu0 0
  %1520 = vmatprep.subr.bf16.mxu0 0
  %1521 = vmatpush1.bf16.msra.mxu0 0
  %1522 = vmatprep.subr.bf16.mxu0 0
  %1523 = vmatpush1.bf16.msra.mxu0 0
  %1524 = vmatprep.subr.bf16.mxu0 0
  %1525 = vmatpush1.bf16.msra.mxu0 0
  %1526 = vmatprep.mubr.bf16.mxu0 0
  %1527 = vmatmul.mubr.bf16.gmra.mrb[0].mxu0 %v1471
  %v1528 = vpop.f32.mrb[0].mxu0
  %v1529 = vadd.f32 %v1456, %v1528
  %v1530 = vpop.f32.mrb[0].mxu0
  %v1531 = vpop.f32.mrb[0].mxu0
  %v1532 = vadd.f32 %v1456, %v1531
  %v1533 = vpop.f32.mrb[0].mxu0
  %1534 = vmatprep.mubr.bf16.mxu0 0
  %1535 = vmatmul.mubr.bf16.gmra.mrb[0].mxu0 %v1474
  %v1536 = vpop.f32.mrb[0].mxu0
  %v1537 = vadd.f32 %v1456, %v1536
  %v1538 = vpop.f32.mrb[0].mxu0
  %v1539 = vpop.f32.mrb[0].mxu0
  %v1540 = vadd.f32 %v1456, %v1539
  %v1541 = vpop.f32.mrb[0].mxu0
  %1542 = vmatprep.mubr.bf16.mxu0 0
  %1543 = vmatmul.mubr.bf16.gmra.mrb[0].mxu0 %v1477
  %v1544 = vpop.f32.mrb[0].mxu0
  %v1545 = vadd.f32 %v1456, %v1544
  %v1546 = vpop.f32.mrb[0].mxu0
  %v1547 = vpop.f32.mrb[0].mxu0
  %v1548 = vadd.f32 %v1456, %v1547
  %v1549 = vpop.f32.mrb[0].mxu0
  %1550 = vmatprep.mubr.bf16.mxu0 0
  %1551 = vmatmul.mubr.bf16.gmra.mrb[0].mxu0 %v1480
  %v1552 = vpop.f32.mrb[0].mxu0
  %v1553 = vadd.f32 %v1456, %v1552
  %v1554 = vpop.f32.mrb[0].mxu0
  %v1555 = vpop.f32.mrb[0].mxu0
  %v1556 = vadd.f32 %v1456, %v1555
  %v1557 = vpop.f32.mrb[0].mxu0
  %1558 = vmatprep.mubr.bf16.mxu0 0
  %1559 = vmatmul.mubr.bf16.gmra.mrb[0].mxu0 %v1483
  %v1560 = vpop.f32.mrb[0].mxu0
  %v1561 = vadd.f32 %v1456, %v1560
  %v1562 = vpop.f32.mrb[0].mxu0
  %v1563 = vpop.f32.mrb[0].mxu0
  %v1564 = vadd.f32 %v1456, %v1563
  %v1565 = vpop.f32.mrb[0].mxu0
  %1566 = vmatprep.mubr.bf16.mxu0 0
  %1567 = vmatmul.mubr.bf16.gmra.mrb[0].mxu0 %v1486
  %v1568 = vpop.f32.mrb[0].mxu0
  %v1569 = vadd.f32 %v1456, %v1568
  %v1570 = vpop.f32.mrb[0].mxu0
  %v1571 = vpop.f32.mrb[0].mxu0
  %v1572 = vadd.f32 %v1456, %v1571
  %v1573 = vpop.f32.mrb[0].mxu0
  %1574 = vmatprep.mubr.bf16.mxu0 0
  %1575 = vmatmul.mubr.bf16.gmra.mrb[0].mxu0 %v1489
  %v1576 = vpop.f32.mrb[0].mxu0
  %v1577 = vadd.f32 %v1456, %v1576
  %v1578 = vpop.f32.mrb[0].mxu0
  %v1579 = vpop.f32.mrb[0].mxu0
  %v1580 = vadd.f32 %v1456, %v1579
  %v1581 = vpop.f32.mrb[0].mxu0
  %1582 = vmatprep.mubr.bf16.mxu0 0
  %1583 = vmatmul.mubr.bf16.gmra.mrb[0].mxu0 %v1492
  %v1584 = vpop.f32.mrb[0].mxu0
  %v1585 = vadd.f32 %v1456, %v1584
  %v1586 = vpop.f32.mrb[0].mxu0
  %v1587 = vpop.f32.mrb[0].mxu0
  %v1588 = vadd.f32 %v1456, %v1587
  %v1589 = vpop.f32.mrb[0].mxu0
  %1590 = vdwg.mxu0
  %v1591 = vmax.f32 %v1529, 0.0
  %v1592 = vmax.f32 %v1532, 0.0
  %v1593 = vmax.f32 %v1537, 0.0
  %v1594 = vmax.f32 %v1540, 0.0
  %v1595 = vmax.f32 %v1545, 0.0
  %v1596 = vmax.f32 %v1548, 0.0
  %v1597 = vmax.f32 %v1553, 0.0
  %v1598 = vmax.f32 %v1556, 0.0
  %v1599 = vmax.f32 %v1561, 0.0
  %v1600 = vmax.f32 %v1564, 0.0
  %v1601 = vmax.f32 %v1569, 0.0
  %v1602 = vmax.f32 %v1572, 0.0
  %v1603 = vmax.f32 %v1577, 0.0
  %v1604 = vmax.f32 %v1580, 0.0
  %v1605 = vmax.f32 %v1585, 0.0
  %v1606 = vmax.f32 %v1588, 0.0
  %v1607 = vld [vmem:[%s19] sm:$0xf]
  %v1608 = vld [vmem:[%s19 + $0x4] sm:$0xf]
  %v1609 = vld [vmem:[%s19 + $0x8] sm:$0xf]
  %v1610 = vld [vmem:[%s19 + $0xc] sm:$0xf]
  %v1611 = vld [vmem:[%s20] sm:$0x1]
  %v1612 = vpack.c.bf16 %v1592, %v1591
  %v1613 = vpack.c.bf16 %v1594, %v1593
  %v1614 = vpack.c.bf16 %v1596, %v1595
  %v1615 = vpack.c.bf16 %v1598, %v1597
  %v1616 = vpack.c.bf16 %v1600, %v1599
  %v1617 = vpack.c.bf16 %v1602, %v1601
  %v1618 = vpack.c.bf16 %v1604, %v1603
  %v1619 = vpack.c.bf16 %v1606, %v1605
  %v1621 = vlaneseq
  %v1622 = vshrl.u32 %v1621, 7
  %v1623 = vsub.s32 0, %v1622
  %v1624 = vrot.slane %v1611, %v1623
  %v1630 = vunpack.c.l.b16 %v1607
  %v1631 = vunpack.c.l.b16 %v1608
  %v1632 = vunpack.c.l.b16 %v1609
  %v1633 = vunpack.c.l.b16 %v1610
  %v1634 = vpack.c.b16 %v1631, %v1630
  %v1635 = vpack.c.b16 %v1633, %v1632
  %v1639 = vsel %vm330, %v1612, 0
  %v1642 = vsel %vm330, %v1613, 0
  %v1645 = vsel %vm330, %v1614, 0
  %v1648 = vsel %vm330, %v1615, 0
  %v1651 = vsel %vm330, %v1616, 0
  %v1654 = vsel %vm330, %v1617, 0
  %v1657 = vsel %vm330, %v1618, 0
  %v1660 = vsel %vm330, %v1619, 0
  %1662 = vmatprep.subr.bf16.mxu0 0
  %1663 = vmatpush1.bf16.msra.mxu0 %v1634
  %1664 = vmatprep.subr.bf16.mxu0 0
  %1665 = vmatpush1.bf16.msra.mxu0 %v1635
  %1666 = vmatprep.subr.bf16.mxu0 0
  %1667 = vmatpush1.bf16.msra.mxu0 0
  %1668 = vmatprep.subr.bf16.mxu0 0
  %1669 = vmatpush1.bf16.msra.mxu0 0
  %1670 = vmatprep.subr.bf16.mxu0 0
  %1671 = vmatpush1.bf16.msra.mxu0 0
  %1672 = vmatprep.subr.bf16.mxu0 0
  %1673 = vmatpush1.bf16.msra.mxu0 0
  %1674 = vmatprep.subr.bf16.mxu0 0
  %1675 = vmatpush1.bf16.msra.mxu0 0
  %1676 = vmatprep.subr.bf16.mxu0 0
  %1677 = vmatpush1.bf16.msra.mxu0 0
  %1678 = vmatprep.subr.bf16.mxu0 0
  %1679 = vmatpush1.bf16.msra.mxu0 0
  %1680 = vmatprep.subr.bf16.mxu0 0
  %1681 = vmatpush1.bf16.msra.mxu0 0
  %1682 = vmatprep.subr.bf16.mxu0 0
  %1683 = vmatpush1.bf16.msra.mxu0 0
  %1684 = vmatprep.subr.bf16.mxu0 0
  %1685 = vmatpush1.bf16.msra.mxu0 0
  %1686 = vmatprep.subr.bf16.mxu0 0
  %1687 = vmatpush1.bf16.msra.mxu0 0
  %1688 = vmatprep.subr.bf16.mxu0 0
  %1689 = vmatpush1.bf16.msra.mxu0 0
  %1690 = vmatprep.subr.bf16.mxu0 0
  %1691 = vmatpush1.bf16.msra.mxu0 0
  %1692 = vmatprep.subr.bf16.mxu0 0
  %1693 = vmatpush1.bf16.msra.mxu0 0
  %1694 = vmatprep.mubr.bf16.mxu0 0
  %1695 = vmatmul.mubr.bf16.gmra.mrb[0].mxu0 %v1639
  %v1696 = vpop.f32.mrb[0].mxu0
  %v1697 = vadd.f32 %v1624, %v1696
  %v1698 = vpop.f32.mrb[0].mxu0
  %v1699 = vpop.f32.mrb[0].mxu0
  %v1700 = vadd.f32 %v1624, %v1699
  %v1701 = vpop.f32.mrb[0].mxu0
  %1702 = vmatprep.mubr.bf16.mxu0 0
  %1703 = vmatmul.mubr.bf16.gmra.mrb[0].mxu0 %v1642
  %v1704 = vpop.f32.mrb[0].mxu0
  %v1705 = vadd.f32 %v1624, %v1704
  %v1706 = vpop.f32.mrb[0].mxu0
  %v1707 = vpop.f32.mrb[0].mxu0
  %v1708 = vadd.f32 %v1624, %v1707
  %v1709 = vpop.f32.mrb[0].mxu0
  %1710 = vmatprep.mubr.bf16.mxu0 0
  %1711 = vmatmul.mubr.bf16.gmra.mrb[0].mxu0 %v1645
  %v1712 = vpop.f32.mrb[0].mxu0
  %v1713 = vadd.f32 %v1624, %v1712
  %v1714 = vpop.f32.mrb[0].mxu0
  %v1715 = vpop.f32.mrb[0].mxu0
  %v1716 = vadd.f32 %v1624, %v1715
  %v1717 = vpop.f32.mrb[0].mxu0
  %1718 = vmatprep.mubr.bf16.mxu0 0
  %1719 = vmatmul.mubr.bf16.gmra.mrb[0].mxu0 %v1648
  %v1720 = vpop.f32.mrb[0].mxu0
  %v1721 = vadd.f32 %v1624, %v1720
  %v1722 = vpop.f32.mrb[0].mxu0
  %v1723 = vpop.f32.mrb[0].mxu0
  %v1724 = vadd.f32 %v1624, %v1723
  %v1725 = vpop.f32.mrb[0].mxu0
  %1726 = vmatprep.mubr.bf16.mxu0 0
  %1727 = vmatmul.mubr.bf16.gmra.mrb[0].mxu0 %v1651
  %v1728 = vpop.f32.mrb[0].mxu0
  %v1729 = vadd.f32 %v1624, %v1728
  %v1730 = vpop.f32.mrb[0].mxu0
  %v1731 = vpop.f32.mrb[0].mxu0
  %v1732 = vadd.f32 %v1624, %v1731
  %v1733 = vpop.f32.mrb[0].mxu0
  %1734 = vmatprep.mubr.bf16.mxu0 0
  %1735 = vmatmul.mubr.bf16.gmra.mrb[0].mxu0 %v1654
  %v1736 = vpop.f32.mrb[0].mxu0
  %v1737 = vadd.f32 %v1624, %v1736
  %v1738 = vpop.f32.mrb[0].mxu0
  %v1739 = vpop.f32.mrb[0].mxu0
  %v1740 = vadd.f32 %v1624, %v1739
  %v1741 = vpop.f32.mrb[0].mxu0
  %1742 = vmatprep.mubr.bf16.mxu0 0
  %1743 = vmatmul.mubr.bf16.gmra.mrb[0].mxu0 %v1657
  %v1744 = vpop.f32.mrb[0].mxu0
  %v1745 = vadd.f32 %v1624, %v1744
  %v1746 = vpop.f32.mrb[0].mxu0
  %v1747 = vpop.f32.mrb[0].mxu0
  %v1748 = vadd.f32 %v1624, %v1747
  %v1749 = vpop.f32.mrb[0].mxu0
  %1750 = vmatprep.mubr.bf16.mxu0 0
  %1751 = vmatmul.mubr.bf16.gmra.mrb[0].mxu0 %v1660
  %v1752 = vpop.f32.mrb[0].mxu0
  %v1753 = vadd.f32 %v1624, %v1752
  %v1754 = vpop.f32.mrb[0].mxu0
  %v1755 = vpop.f32.mrb[0].mxu0
  %v1756 = vadd.f32 %v1624, %v1755
  %v1757 = vpop.f32.mrb[0].mxu0
  %1758 = vdwg.mxu0
  %v1759 = vld [vmem:[%s21] sm:$0xf]
  %v1760 = vld [vmem:[%s21 + $0x4] sm:$0xf]
  %v1761 = vld [vmem:[%s21 + $0x8] sm:$0xf]
  %v1762 = vld [vmem:[%s21 + $0xc] sm:$0xf]
  %v1763 = vld [vmem:[%s22] sm:$0xf]
  %v1764 = vld [vmem:[%s22 + $0x4] sm:$0xf]
  %v1765 = vld [vmem:[%s23] sm:$0x1]
  %v1766 = vpack.c.bf16 %v1700, %v1697
  %v1767 = vpack.c.bf16 %v1708, %v1705
  %v1768 = vpack.c.bf16 %v1716, %v1713
  %v1769 = vpack.c.bf16 %v1724, %v1721
  %v1770 = vpack.c.bf16 %v1732, %v1729
  %v1771 = vpack.c.bf16 %v1740, %v1737
  %v1772 = vpack.c.bf16 %v1748, %v1745
  %v1773 = vpack.c.bf16 %v1756, %v1753
  %v1776 = vunpack.c.l.b16 %v1763
  %v1777 = vunpack.c.l.b16 %v1764
  %v1778 = vpack.c.b16 %v1777, %v1776
  %vm1779 = vcmask 121856
  %v1781 = vsel %vm1779, %v124, 0
  %v1784 = vsel %vm1779, %v125, 0
  %v1787 = vsel %vm1779, %v126, 0
  %v1790 = vsel %vm1779, %v127, 0
  %v1793 = vsel %vm1779, %v128, 0
  %v1796 = vsel %vm1779, %v129, 0
  %v1799 = vsel %vm1779, %v130, 0
  %v1802 = vsel %vm1779, %v131, 0
  %vm1804 = vcmask 1046528
  %vm1805 = vcmask 1047552
  %v1806 = vsel %vm1804, 4294967295, 65535
  %v1807 = vsel %vm1805, %v1806, 0
  %v1809 = vand.u32 %v1778, %v1807
  %1811 = vmatprep.subr.bf16.mxu0 0
  %1812 = vmatpush1.bf16.msra.mxu0 %v1809
  %1813 = vmatprep.subr.bf16.mxu0 0
  %1814 = vmatpush1.bf16.msra.mxu0 0
  %1815 = vmatprep.subr.bf16.mxu0 0
  %1816 = vmatpush1.bf16.msra.mxu0 0
  %1817 = vmatprep.subr.bf16.mxu0 0
  %1818 = vmatpush1.bf16.msra.mxu0 0
  %1819 = vmatprep.subr.bf16.mxu0 0
  %1820 = vmatpush1.bf16.msra.mxu0 0
  %1821 = vmatprep.subr.bf16.mxu0 0
  %1822 = vmatpush1.bf16.msra.mxu0 0
  %1823 = vmatprep.subr.bf16.mxu0 0
  %1824 = vmatpush1.bf16.msra.mxu0 0
  %1825 = vmatprep.subr.bf16.mxu0 0
  %1826 = vmatpush1.bf16.msra.mxu0 0
  %1827 = vmatprep.subr.bf16.mxu0 0
  %1828 = vmatpush1.bf16.msra.mxu0 0
  %1829 = vmatprep.subr.bf16.mxu0 0
  %1830 = vmatpush1.bf16.msra.mxu0 0
  %1831 = vmatprep.subr.bf16.mxu0 0
  %1832 = vmatpush1.bf16.msra.mxu0 0
  %1833 = vmatprep.subr.bf16.mxu0 0
  %1834 = vmatpush1.bf16.msra.mxu0 0
  %1835 = vmatprep.subr.bf16.mxu0 0
  %1836 = vmatpush1.bf16.msra.mxu0 0
  %1837 = vmatprep.subr.bf16.mxu0 0
  %1838 = vmatpush1.bf16.msra.mxu0 0
  %1839 = vmatprep.subr.bf16.mxu0 0
  %1840 = vmatpush1.bf16.msra.mxu0 0
  %1841 = vmatprep.subr.bf16.mxu0 0
  %1842 = vmatpush1.bf16.msra.mxu0 0
  %1843 = vmatprep.mubr.bf16.mxu0 0
  %1844 = vmatmul.mubr.bf16.gmra.mrb[0].mxu0 %v1781
  %v1845 = vpop.f32.mrb[0].mxu0
  %v1846 = vadd.f32 0.0, %v1845
  %v1847 = vpop.f32.mrb[0].mxu0
  %v1848 = vpop.f32.mrb[0].mxu0
  %v1849 = vadd.f32 0.0, %v1848
  %v1850 = vpop.f32.mrb[0].mxu0
  %1851 = vmatprep.mubr.bf16.mxu0 0
  %1852 = vmatmul.mubr.bf16.gmra.mrb[0].mxu0 %v1784
  %v1853 = vpop.f32.mrb[0].mxu0
  %v1854 = vadd.f32 0.0, %v1853
  %v1855 = vpop.f32.mrb[0].mxu0
  %v1856 = vpop.f32.mrb[0].mxu0
  %v1857 = vadd.f32 0.0, %v1856
  %v1858 = vpop.f32.mrb[0].mxu0
  %1859 = vmatprep.mubr.bf16.mxu0 0
  %1860 = vmatmul.mubr.bf16.gmra.mrb[0].mxu0 %v1787
  %v1861 = vpop.f32.mrb[0].mxu0
  %v1862 = vadd.f32 0.0, %v1861
  %v1863 = vpop.f32.mrb[0].mxu0
  %v1864 = vpop.f32.mrb[0].mxu0
  %v1865 = vadd.f32 0.0, %v1864
  %v1866 = vpop.f32.mrb[0].mxu0
  %1867 = vmatprep.mubr.bf16.mxu0 0
  %1868 = vmatmul.mubr.bf16.gmra.mrb[0].mxu0 %v1790
  %v1869 = vpop.f32.mrb[0].mxu0
  %v1870 = vadd.f32 0.0, %v1869
  %v1871 = vpop.f32.mrb[0].mxu0
  %v1872 = vpop.f32.mrb[0].mxu0
  %v1873 = vadd.f32 0.0, %v1872
  %v1874 = vpop.f32.mrb[0].mxu0
  %1875 = vmatprep.mubr.bf16.mxu0 0
  %1876 = vmatmul.mubr.bf16.gmra.mrb[0].mxu0 %v1793
  %v1877 = vpop.f32.mrb[0].mxu0
  %v1878 = vadd.f32 0.0, %v1877
  %v1879 = vpop.f32.mrb[0].mxu0
  %v1880 = vpop.f32.mrb[0].mxu0
  %v1881 = vadd.f32 0.0, %v1880
  %v1882 = vpop.f32.mrb[0].mxu0
  %1883 = vmatprep.mubr.bf16.mxu0 0
  %1884 = vmatmul.mubr.bf16.gmra.mrb[0].mxu0 %v1796
  %v1885 = vpop.f32.mrb[0].mxu0
  %v1886 = vadd.f32 0.0, %v1885
  %v1887 = vpop.f32.mrb[0].mxu0
  %v1888 = vpop.f32.mrb[0].mxu0
  %v1889 = vadd.f32 0.0, %v1888
  %v1890 = vpop.f32.mrb[0].mxu0
  %1891 = vmatprep.mubr.bf16.mxu0 0
  %1892 = vmatmul.mubr.bf16.gmra.mrb[0].mxu0 %v1799
  %v1893 = vpop.f32.mrb[0].mxu0
  %v1894 = vadd.f32 0.0, %v1893
  %v1895 = vpop.f32.mrb[0].mxu0
  %v1896 = vpop.f32.mrb[0].mxu0
  %v1897 = vadd.f32 0.0, %v1896
  %v1898 = vpop.f32.mrb[0].mxu0
  %1899 = vmatprep.mubr.bf16.mxu0 0
  %1900 = vmatmul.mubr.bf16.gmra.mrb[0].mxu0 %v1802
  %v1901 = vpop.f32.mrb[0].mxu0
  %v1902 = vadd.f32 0.0, %v1901
  %v1903 = vpop.f32.mrb[0].mxu0
  %v1904 = vpop.f32.mrb[0].mxu0
  %v1905 = vadd.f32 0.0, %v1904
  %v1906 = vpop.f32.mrb[0].mxu0
  %1907 = vdwg.mxu0
  %v1912 = vunpack.c.l.b16 %v1759
  %v1913 = vunpack.c.l.b16 %v1760
  %v1914 = vunpack.c.l.b16 %v1761
  %v1915 = vunpack.c.l.b16 %v1762
  %v1916 = vpack.c.b16 %v1913, %v1912
  %v1917 = vpack.c.b16 %v1915, %v1914
  %v1921 = vsel %vm330, %v1766, 0
  %v1924 = vsel %vm330, %v1767, 0
  %v1927 = vsel %vm330, %v1768, 0
  %v1930 = vsel %vm330, %v1769, 0
  %v1933 = vsel %vm330, %v1770, 0
  %v1936 = vsel %vm330, %v1771, 0
  %v1939 = vsel %vm330, %v1772, 0
  %v1942 = vsel %vm330, %v1773, 0
  %1944 = vmatprep.subr.bf16.mxu0 0
  %1945 = vmatpush1.bf16.msra.mxu0 %v1916
  %1946 = vmatprep.subr.bf16.mxu0 0
  %1947 = vmatpush1.bf16.msra.mxu0 %v1917
  %1948 = vmatprep.subr.bf16.mxu0 0
  %1949 = vmatpush1.bf16.msra.mxu0 0
  %1950 = vmatprep.subr.bf16.mxu0 0
  %1951 = vmatpush1.bf16.msra.mxu0 0
  %1952 = vmatprep.subr.bf16.mxu0 0
  %1953 = vmatpush1.bf16.msra.mxu0 0
  %1954 = vmatprep.subr.bf16.mxu0 0
  %1955 = vmatpush1.bf16.msra.mxu0 0
  %1956 = vmatprep.subr.bf16.mxu0 0
  %1957 = vmatpush1.bf16.msra.mxu0 0
  %1958 = vmatprep.subr.bf16.mxu0 0
  %1959 = vmatpush1.bf16.msra.mxu0 0
  %1960 = vmatprep.subr.bf16.mxu0 0
  %1961 = vmatpush1.bf16.msra.mxu0 0
  %1962 = vmatprep.subr.bf16.mxu0 0
  %1963 = vmatpush1.bf16.msra.mxu0 0
  %1964 = vmatprep.subr.bf16.mxu0 0
  %1965 = vmatpush1.bf16.msra.mxu0 0
  %1966 = vmatprep.subr.bf16.mxu0 0
  %1967 = vmatpush1.bf16.msra.mxu0 0
  %1968 = vmatprep.subr.bf16.mxu0 0
  %1969 = vmatpush1.bf16.msra.mxu0 0
  %1970 = vmatprep.subr.bf16.mxu0 0
  %1971 = vmatpush1.bf16.msra.mxu0 0
  %1972 = vmatprep.subr.bf16.mxu0 0
  %1973 = vmatpush1.bf16.msra.mxu0 0
  %1974 = vmatprep.subr.bf16.mxu0 0
  %1975 = vmatpush1.bf16.msra.mxu0 0
  %1976 = vmatprep.mubr.bf16.mxu0 0
  %1977 = vmatmul.mubr.bf16.gmra.mrb[0].mxu0 %v1921
  %v1978 = vpop.f32.mrb[0].mxu0
  %v1979 = vadd.f32 %v1846, %v1978
  %v1980 = vpop.f32.mrb[0].mxu0
  %v1981 = vpop.f32.mrb[0].mxu0
  %v1982 = vadd.f32 %v1849, %v1981
  %v1983 = vpop.f32.mrb[0].mxu0
  %1984 = vmatprep.mubr.bf16.mxu0 0
  %1985 = vmatmul.mubr.bf16.gmra.mrb[0].mxu0 %v1924
  %v1986 = vpop.f32.mrb[0].mxu0
  %v1987 = vadd.f32 %v1854, %v1986
  %v1988 = vpop.f32.mrb[0].mxu0
  %v1989 = vpop.f32.mrb[0].mxu0
  %v1990 = vadd.f32 %v1857, %v1989
  %v1991 = vpop.f32.mrb[0].mxu0
  %1992 = vmatprep.mubr.bf16.mxu0 0
  %1993 = vmatmul.mubr.bf16.gmra.mrb[0].mxu0 %v1927
  %v1994 = vpop.f32.mrb[0].mxu0
  %v1995 = vadd.f32 %v1862, %v1994
  %v1996 = vpop.f32.mrb[0].mxu0
  %v1997 = vpop.f32.mrb[0].mxu0
  %v1998 = vadd.f32 %v1865, %v1997
  %v1999 = vpop.f32.mrb[0].mxu0
  %2000 = vmatprep.mubr.bf16.mxu0 0
  %2001 = vmatmul.mubr.bf16.gmra.mrb[0].mxu0 %v1930
  %v2002 = vpop.f32.mrb[0].mxu0
  %v2003 = vadd.f32 %v1870, %v2002
  %v2004 = vpop.f32.mrb[0].mxu0
  %v2005 = vpop.f32.mrb[0].mxu0
  %v2006 = vadd.f32 %v1873, %v2005
  %v2007 = vpop.f32.mrb[0].mxu0
  %2008 = vmatprep.mubr.bf16.mxu0 0
  %2009 = vmatmul.mubr.bf16.gmra.mrb[0].mxu0 %v1933
  %v2010 = vpop.f32.mrb[0].mxu0
  %v2011 = vadd.f32 %v1878, %v2010
  %v2012 = vpop.f32.mrb[0].mxu0
  %v2013 = vpop.f32.mrb[0].mxu0
  %v2014 = vadd.f32 %v1881, %v2013
  %v2015 = vpop.f32.mrb[0].mxu0
  %2016 = vmatprep.mubr.bf16.mxu0 0
  %2017 = vmatmul.mubr.bf16.gmra.mrb[0].mxu0 %v1936
  %v2018 = vpop.f32.mrb[0].mxu0
  %v2019 = vadd.f32 %v1886, %v2018
  %v2020 = vpop.f32.mrb[0].mxu0
  %v2021 = vpop.f32.mrb[0].mxu0
  %v2022 = vadd.f32 %v1889, %v2021
  %v2023 = vpop.f32.mrb[0].mxu0
  %2024 = vmatprep.mubr.bf16.mxu0 0
  %2025 = vmatmul.mubr.bf16.gmra.mrb[0].mxu0 %v1939
  %v2026 = vpop.f32.mrb[0].mxu0
  %v2027 = vadd.f32 %v1894, %v2026
  %v2028 = vpop.f32.mrb[0].mxu0
  %v2029 = vpop.f32.mrb[0].mxu0
  %v2030 = vadd.f32 %v1897, %v2029
  %v2031 = vpop.f32.mrb[0].mxu0
  %2032 = vmatprep.mubr.bf16.mxu0 0
  %2033 = vmatmul.mubr.bf16.gmra.mrb[0].mxu0 %v1942
  %v2034 = vpop.f32.mrb[0].mxu0
  %v2035 = vadd.f32 %v1902, %v2034
  %v2036 = vpop.f32.mrb[0].mxu0
  %v2037 = vpop.f32.mrb[0].mxu0
  %v2038 = vadd.f32 %v1905, %v2037
  %v2039 = vpop.f32.mrb[0].mxu0
  %2040 = vdwg.mxu0
  %v2042 = vlaneseq
  %v2043 = vshrl.u32 %v2042, 7
  %v2044 = vsub.s32 0, %v2043
  %v2045 = vrot.slane %v1765, %v2044
  %v2047 = vadd.f32 %v1979, %v2045
  %v2048 = vadd.f32 %v1982, %v2045
  %v2049 = vadd.f32 %v1987, %v2045
  %v2050 = vadd.f32 %v1990, %v2045
  %v2051 = vadd.f32 %v1995, %v2045
  %v2052 = vadd.f32 %v1998, %v2045
  %v2053 = vadd.f32 %v2003, %v2045
  %v2054 = vadd.f32 %v2006, %v2045
  %v2055 = vadd.f32 %v2011, %v2045
  %v2056 = vadd.f32 %v2014, %v2045
  %v2057 = vadd.f32 %v2019, %v2045
  %v2058 = vadd.f32 %v2022, %v2045
  %v2059 = vadd.f32 %v2027, %v2045
  %v2060 = vadd.f32 %v2030, %v2045
  %v2061 = vadd.f32 %v2035, %v2045
  %v2062 = vadd.f32 %v2038, %v2045
  %v2063 = vmax.f32 %v2047, 0.0
  %v2064 = vmax.f32 %v2048, 0.0
  %v2065 = vmax.f32 %v2049, 0.0
  %v2066 = vmax.f32 %v2050, 0.0
  %v2067 = vmax.f32 %v2051, 0.0
  %v2068 = vmax.f32 %v2052, 0.0
  %v2069 = vmax.f32 %v2053, 0.0
  %v2070 = vmax.f32 %v2054, 0.0
  %v2071 = vmax.f32 %v2055, 0.0
  %v2072 = vmax.f32 %v2056, 0.0
  %v2073 = vmax.f32 %v2057, 0.0
  %v2074 = vmax.f32 %v2058, 0.0
  %v2075 = vmax.f32 %v2059, 0.0
  %v2076 = vmax.f32 %v2060, 0.0
  %v2077 = vmax.f32 %v2061, 0.0
  %v2078 = vmax.f32 %v2062, 0.0
  %v2079 = vld [vmem:[%s24] sm:$0xf]
  %v2080 = vld [vmem:[%s24 + $0x4] sm:$0xf]
  %v2081 = vld [vmem:[%s25] sm:$0x1]
  %v2082 = vpack.c.bf16 %v2064, %v2063
  %v2083 = vpack.c.bf16 %v2066, %v2065
  %v2084 = vpack.c.bf16 %v2068, %v2067
  %v2085 = vpack.c.bf16 %v2070, %v2069
  %v2086 = vpack.c.bf16 %v2072, %v2071
  %v2087 = vpack.c.bf16 %v2074, %v2073
  %v2088 = vpack.c.bf16 %v2076, %v2075
  %v2089 = vpack.c.bf16 %v2078, %v2077
  %v2091 = vlaneseq
  %v2092 = vshrl.u32 %v2091, 7
  %v2093 = vsub.s32 0, %v2092
  %v2094 = vrot.slane %v2081, %v2093
  %v2098 = vunpack.c.l.b16 %v2079
  %v2099 = vunpack.c.l.b16 %v2080
  %v2100 = vpack.c.b16 %v2099, %v2098
  %vm2102 = vcmask 130048
  %v2104 = vsel %vm2102, %v2082, 0
  %v2107 = vsel %vm2102, %v2083, 0
  %v2110 = vsel %vm2102, %v2084, 0
  %v2113 = vsel %vm2102, %v2085, 0
  %v2116 = vsel %vm2102, %v2086, 0
  %v2119 = vsel %vm2102, %v2087, 0
  %v2122 = vsel %vm2102, %v2088, 0
  %v2125 = vsel %vm2102, %v2089, 0
  %2127 = vmatprep.subr.bf16.mxu0 0
  %2128 = vmatpush1.bf16.msra.mxu0 %v2100
  %2129 = vmatprep.subr.bf16.mxu0 0
  %2130 = vmatpush1.bf16.msra.mxu0 0
  %2131 = vmatprep.subr.bf16.mxu0 0
  %2132 = vmatpush1.bf16.msra.mxu0 0
  %2133 = vmatprep.subr.bf16.mxu0 0
  %2134 = vmatpush1.bf16.msra.mxu0 0
  %2135 = vmatprep.subr.bf16.mxu0 0
  %2136 = vmatpush1.bf16.msra.mxu0 0
  %2137 = vmatprep.subr.bf16.mxu0 0
  %2138 = vmatpush1.bf16.msra.mxu0 0
  %2139 = vmatprep.subr.bf16.mxu0 0
  %2140 = vmatpush1.bf16.msra.mxu0 0
  %2141 = vmatprep.subr.bf16.mxu0 0
  %2142 = vmatpush1.bf16.msra.mxu0 0
  %2143 = vmatprep.subr.bf16.mxu0 0
  %2144 = vmatpush1.bf16.msra.mxu0 0
  %2145 = vmatprep.subr.bf16.mxu0 0
  %2146 = vmatpush1.bf16.msra.mxu0 0
  %2147 = vmatprep.subr.bf16.mxu0 0
  %2148 = vmatpush1.bf16.msra.mxu0 0
  %2149 = vmatprep.subr.bf16.mxu0 0
  %2150 = vmatpush1.bf16.msra.mxu0 0
  %2151 = vmatprep.subr.bf16.mxu0 0
  %2152 = vmatpush1.bf16.msra.mxu0 0
  %2153 = vmatprep.subr.bf16.mxu0 0
  %2154 = vmatpush1.bf16.msra.mxu0 0
  %2155 = vmatprep.subr.bf16.mxu0 0
  %2156 = vmatpush1.bf16.msra.mxu0 0
  %2157 = vmatprep.subr.bf16.mxu0 0
  %2158 = vmatpush1.bf16.msra.mxu0 0
  %2159 = vmatprep.mubr.bf16.mxu0 0
  %2160 = vmatmul.mubr.bf16.gmra.mrb[0].mxu0 %v2104
  %v2161 = vpop.f32.mrb[0].mxu0
  %v2162 = vadd.f32 %v2094, %v2161
  %v2163 = vpop.f32.mrb[0].mxu0
  %v2164 = vpop.f32.mrb[0].mxu0
  %v2165 = vadd.f32 %v2094, %v2164
  %v2166 = vpop.f32.mrb[0].mxu0
  %2167 = vmatprep.mubr.bf16.mxu0 0
  %2168 = vmatmul.mubr.bf16.gmra.mrb[0].mxu0 %v2107
  %v2169 = vpop.f32.mrb[0].mxu0
  %v2170 = vadd.f32 %v2094, %v2169
  %v2171 = vpop.f32.mrb[0].mxu0
  %v2172 = vpop.f32.mrb[0].mxu0
  %v2173 = vadd.f32 %v2094, %v2172
  %v2174 = vpop.f32.mrb[0].mxu0
  %2175 = vmatprep.mubr.bf16.mxu0 0
  %2176 = vmatmul.mubr.bf16.gmra.mrb[0].mxu0 %v2110
  %v2177 = vpop.f32.mrb[0].mxu0
  %v2178 = vadd.f32 %v2094, %v2177
  %v2179 = vpop.f32.mrb[0].mxu0
  %v2180 = vpop.f32.mrb[0].mxu0
  %v2181 = vadd.f32 %v2094, %v2180
  %v2182 = vpop.f32.mrb[0].mxu0
  %2183 = vmatprep.mubr.bf16.mxu0 0
  %2184 = vmatmul.mubr.bf16.gmra.mrb[0].mxu0 %v2113
  %v2185 = vpop.f32.mrb[0].mxu0
  %v2186 = vadd.f32 %v2094, %v2185
  %v2187 = vpop.f32.mrb[0].mxu0
  %v2188 = vpop.f32.mrb[0].mxu0
  %v2189 = vadd.f32 %v2094, %v2188
  %v2190 = vpop.f32.mrb[0].mxu0
  %2191 = vmatprep.mubr.bf16.mxu0 0
  %2192 = vmatmul.mubr.bf16.gmra.mrb[0].mxu0 %v2116
  %v2193 = vpop.f32.mrb[0].mxu0
  %v2194 = vadd.f32 %v2094, %v2193
  %v2195 = vpop.f32.mrb[0].mxu0
  %v2196 = vpop.f32.mrb[0].mxu0
  %v2197 = vadd.f32 %v2094, %v2196
  %v2198 = vpop.f32.mrb[0].mxu0
  %2199 = vmatprep.mubr.bf16.mxu0 0
  %2200 = vmatmul.mubr.bf16.gmra.mrb[0].mxu0 %v2119
  %v2201 = vpop.f32.mrb[0].mxu0
  %v2202 = vadd.f32 %v2094, %v2201
  %v2203 = vpop.f32.mrb[0].mxu0
  %v2204 = vpop.f32.mrb[0].mxu0
  %v2205 = vadd.f32 %v2094, %v2204
  %v2206 = vpop.f32.mrb[0].mxu0
  %2207 = vmatprep.mubr.bf16.mxu0 0
  %2208 = vmatmul.mubr.bf16.gmra.mrb[0].mxu0 %v2122
  %v2209 = vpop.f32.mrb[0].mxu0
  %v2210 = vadd.f32 %v2094, %v2209
  %v2211 = vpop.f32.mrb[0].mxu0
  %v2212 = vpop.f32.mrb[0].mxu0
  %v2213 = vadd.f32 %v2094, %v2212
  %v2214 = vpop.f32.mrb[0].mxu0
  %2215 = vmatprep.mubr.bf16.mxu0 0
  %2216 = vmatmul.mubr.bf16.gmra.mrb[0].mxu0 %v2125
  %v2217 = vpop.f32.mrb[0].mxu0
  %v2218 = vadd.f32 %v2094, %v2217
  %v2219 = vpop.f32.mrb[0].mxu0
  %v2220 = vpop.f32.mrb[0].mxu0
  %v2221 = vadd.f32 %v2094, %v2220
  %v2222 = vpop.f32.mrb[0].mxu0
  %2223 = vdwg.mxu0
  %2240 = vrot.lane.b32.xlu0 %v1697, 99
  %v2241 = vpop.permute.xlu0 %2240
  %2242 = vrot.lane.b32.xlu0 %v1700, 99
  %v2243 = vpop.permute.xlu0 %2242
  %2244 = vrot.lane.b32.xlu0 %v1705, 99
  %v2245 = vpop.permute.xlu0 %2244
  %2246 = vrot.lane.b32.xlu0 %v1708, 99
  %v2247 = vpop.permute.xlu0 %2246
  %2248 = vrot.lane.b32.xlu0 %v1713, 99
  %v2249 = vpop.permute.xlu0 %2248
  %2250 = vrot.lane.b32.xlu0 %v1716, 99
  %v2251 = vpop.permute.xlu0 %2250
  %2252 = vrot.lane.b32.xlu0 %v1721, 99
  %v2253 = vpop.permute.xlu0 %2252
  %2254 = vrot.lane.b32.xlu0 %v1724, 99
  %v2255 = vpop.permute.xlu0 %2254
  %2256 = vrot.lane.b32.xlu0 %v1729, 99
  %v2257 = vpop.permute.xlu0 %2256
  %2258 = vrot.lane.b32.xlu0 %v1732, 99
  %v2259 = vpop.permute.xlu0 %2258
  %2260 = vrot.lane.b32.xlu0 %v1737, 99
  %v2261 = vpop.permute.xlu0 %2260
  %2262 = vrot.lane.b32.xlu0 %v1740, 99
  %v2263 = vpop.permute.xlu0 %2262
  %2264 = vrot.lane.b32.xlu0 %v1745, 99
  %v2265 = vpop.permute.xlu0 %2264
  %2266 = vrot.lane.b32.xlu0 %v1748, 99
  %v2267 = vpop.permute.xlu0 %2266
  %2268 = vrot.lane.b32.xlu0 %v1753, 99
  %v2269 = vpop.permute.xlu0 %2268
  %2270 = vrot.lane.b32.xlu0 %v1756, 99
  %v2271 = vpop.permute.xlu0 %2270
  %vm2288 = vcmask 23552
  %v2289 = vsel %vm2288, %v2162, %v2241
  %v2290 = vsel %vm2288, %v2165, %v2243
  %v2291 = vsel %vm2288, %v2170, %v2245
  %v2292 = vsel %vm2288, %v2173, %v2247
  %v2293 = vsel %vm2288, %v2178, %v2249
  %v2294 = vsel %vm2288, %v2181, %v2251
  %v2295 = vsel %vm2288, %v2186, %v2253
  %v2296 = vsel %vm2288, %v2189, %v2255
  %v2297 = vsel %vm2288, %v2194, %v2257
  %v2298 = vsel %vm2288, %v2197, %v2259
  %v2299 = vsel %vm2288, %v2202, %v2261
  %v2300 = vsel %vm2288, %v2205, %v2263
  %v2301 = vsel %vm2288, %v2210, %v2265
  %v2302 = vsel %vm2288, %v2213, %v2267
  %v2303 = vsel %vm2288, %v2218, %v2269
  %v2304 = vsel %vm2288, %v2221, %v2271
  %vm2305 = vcmask 31744
  %2306 = vst.msk [vmem:[%s26] sm:$0xff] %vm2305, %v2289
  %2307 = vst.msk [vmem:[%s26 + $0x8] sm:$0xff] %vm2305, %v2290
  %2308 = vst.msk [vmem:[%s26 + $0x10] sm:$0xff] %vm2305, %v2291
  %2309 = vst.msk [vmem:[%s26 + $0x18] sm:$0xff] %vm2305, %v2292
  %2310 = vst.msk [vmem:[%s26 + $0x20] sm:$0xff] %vm2305, %v2293
  %2311 = vst.msk [vmem:[%s26 + $0x28] sm:$0xff] %vm2305, %v2294
  %2312 = vst.msk [vmem:[%s26 + $0x30] sm:$0xff] %vm2305, %v2295
  %2313 = vst.msk [vmem:[%s26 + $0x38] sm:$0xff] %vm2305, %v2296
  %2314 = vst.msk [vmem:[%s26 + $0x40] sm:$0xff] %vm2305, %v2297
  %2315 = vst.msk [vmem:[%s26 + $0x48] sm:$0xff] %vm2305, %v2298
  %2316 = vst.msk [vmem:[%s26 + $0x50] sm:$0xff] %vm2305, %v2299
  %2317 = vst.msk [vmem:[%s26 + $0x58] sm:$0xff] %vm2305, %v2300
  %2318 = vst.msk [vmem:[%s26 + $0x60] sm:$0xff] %vm2305, %v2301
  %2319 = vst.msk [vmem:[%s26 + $0x68] sm:$0xff] %vm2305, %v2302
  %2320 = vst.msk [vmem:[%s26 + $0x70] sm:$0xff] %vm2305, %v2303
  %2321 = vst.msk [vmem:[%s26 + $0x78] sm:$0xff] %vm2305, %v2304
  // Predicated region
  $region106: #{tpu_custom_call.1} parent=0 // pred_check
    _
  $region107: #{tpu_custom_call.1} parent=0 // pred_check_branch
    %2323 = sbr.rel (0) target = $region109
  $region108: #{tpu_custom_call.1} parent=0 // pred_region
    _
  $region109: #{tpu_custom_call.1} parent=0 // pred_fallthru
    _
  // Predicated region
  $region110: #{tpu_custom_call.1} parent=0 // pred_check
    _
  $region111: #{tpu_custom_call.1} parent=0 // pred_check_branch
    %2325 = sbr.rel (0) target = $region113
  $region112: #{tpu_custom_call.1} parent=0 // pred_region
    _
  $region113: #{tpu_custom_call.1} parent=0 // pred_fallthru
    _

</llo_original>
